<compile_context>
chip_gen: v7x
topology: tpu7x:2x2x1
jax: 0.10.0
libtpu: 0.0.40
codegen_flags: <defaults>
</compile_context>

<pallas_src>
import numpy as np
import jax
import jax.numpy as jnp
from jax.experimental import pallas as pl
from jax.experimental.pallas import tpu as pltpu


# ----------------------------------------------------------------- host-side static matrices
def _adaptive_avg_pool_matrix(in_size: int, out_size: int) -> np.ndarray:
    """(out_size, in_size) matrix implementing torch AdaptiveAvgPool1d semantics."""
    A = np.zeros((out_size, in_size), dtype=np.float32)
    for i in range(out_size):
        start = (i * in_size) // out_size
        end = -((-(i + 1) * in_size) // out_size)  # ceil((i+1)*in/out)
        A[i, start:end] = 1.0 / (end - start)
    return A


def _bilinear_upsample_matrix(out_size: int, in_size: int) -> np.ndarray:
    """(out_size, in_size) matrix for 1-D linear interpolation, align_corners=True."""
    L = np.zeros((out_size, in_size), dtype=np.float32)
    for o in range(out_size):
        if in_size == 1 or out_size == 1:
            src = 0.0
        else:
            src = o * (in_size - 1) / (out_size - 1)
        i0 = min(int(np.floor(src)), in_size - 1)
        i1 = min(i0 + 1, in_size - 1)
        frac = src - i0
        L[o, i0] += 1.0 - frac
        L[o, i1] += frac
    return L


# ----------------------------------------------------------------- kernel
def _make_psp_kernel(ss, c_out, cc, bb, h, w, g):
    hw = h * w
    n_groups = h // g

    def kernel(x_ref, sht_ref, swt_ref, wft_ref, bias_ref, o_ref, z_ref, acc_ref):
        # x_ref:   (cc, bb*W, H)   bf16  input chunk, spatially transposed (lanes = h)
        # sht_ref: (H, SS*H)       bf16  S_h^k.T for every branch (last block = I_H)
        # swt_ref: (SS, W, W)      bf16  S_w^k.T per branch (last = I_W)
        # wft_ref: (SS, Cout, cc)  bf16  folded (bottleneck-block @ stage-conv) weight chunk
        # bias_ref:(Cout, 1)       f32   bottleneck bias
        # o_ref:   (Cout, bb*H*W)  bf16  lane-dense output block, lanes ordered (b, h, w)
        # z_ref:   (cc, bb*H*W)    bf16  staging scratch for one branch (lane merged)
        # acc_ref: (Cout, bb*H*W)  f32   accumulator across branches & channel chunks
        j = pl.program_id(1)

        @pl.when(j == 0)
        def _():
            acc_ref[...] = jnp.zeros_like(acc_ref)

        # 1) H-mix for all SS branches at once: one MXU matmul (K=H, N=SS*H).
        x2 = x_ref[...].reshape(cc * bb * w, h)                # leading-dims merge only
        t = jnp.dot(x2, sht_ref[...], preferred_element_type=jnp.float32)

        # 2) single minor-dims transpose (XLU), done in bf16 to halve relayout bytes.
        tt = jnp.swapaxes(t.astype(jnp.bfloat16).reshape(cc * bb, w, ss * h), 1, 2)
        # tt: (cc*bb, SS*H, W) bf16, lanes = w

        for k in range(ss):                                    # SS = num_scales + 1 (static)
            # 3) W-mix of branch k: (cc*bb*H, W) @ (W, W).
            u = tt[:, k * h:(k + 1) * h, :].reshape(cc * bb * h, w)
            v = jnp.dot(u, swt_ref[k], preferred_element_type=jnp.float32)
            v4 = v.reshape(cc, bb, h, w)                       # leading split only

            # 4) (H, W) -> H*W lane merge: assemble g rows at a time in registers and store
            #    wide (g*W-lane) bf16 tiles into the staging buffer.  Batch is folded into
            #    the lane axis so the conv matmul below sees N = bb*H*W.
            #    (bb and H/g are small here; convert to lax.fori_loop if they grow large.)
            for bi in range(bb):
                for hg in range(n_groups):
                    rows = [v4[:, bi, hg * g + r, :] for r in range(g)]
                    tile = jnp.concatenate(rows, axis=-1)       # (cc, g*W) f32
                    lo = bi * hw + hg * (g * w)
                    z_ref[:, lo:lo + g * w] = tile.astype(jnp.bfloat16)

            # 5) folded 1x1-conv contribution of branch k: ONE (Cout, cc) @ (cc, bb*H*W)
            #    matmul, accumulated into the f32 VMEM accumulator (no per-batch loop,
            #    no register-resident accumulator list).
            acc_ref[...] += jnp.dot(wft_ref[k], z_ref[...],
                                    preferred_element_type=jnp.float32)

        # 6) finalize on the last channel chunk: bias + ReLU, single fully lane-dense store.
        @pl.when(j == pl.num_programs(1) - 1)
        def _():
            o_ref[...] = jnp.maximum(acc_ref[...] + bias_ref[...], 0.0).astype(o_ref.dtype)

    return kernel


# ----------------------------------------------------------------- wrapper
def psp_module_forward(x_nchw, params, kernel_size=(1, 2, 3, 6),
                       batch_tile=1, channel_chunk=None, vmem_limit_mb=48):
    b, c, h, w = x_nchw.shape
    c_out = params["conv_bias"].shape[0]
    s = len(kernel_size)
    ss = s + 1
    hw = h * w
    bb = int(batch_tile)                       # default 1 -> multi-step grid (pipelining +
    cc = c if channel_chunk is None else int(channel_chunk)  # megacore on the parallel axis)

    assert b % bb == 0, "batch must be divisible by batch_tile"
    assert c % cc == 0, "channels must be divisible by channel_chunk"
    assert cc == c or cc % 128 == 0, "partial channel chunks must be multiples of 128"
    assert (bb * w) % 8 == 0 or bb * w == b * w, "bb*W must be a multiple of 8"
    assert (bb * hw) % 128 == 0 or bb == b, "bb*H*W must be a multiple of 128"

    # lane-merge group size: largest divisor of H whose merged tile width g*W <= 512 lanes.
    g = 1
    for cand in range(1, h + 1):
        if h % cand == 0 and cand * w <= 512:
            g = cand

    # Separable spatial operators per branch (upsample @ adaptive-avg-pool), transposed for
    # right-multiplication; the raw-x concat path is an extra branch with identity operators.
    sh_ops = [_bilinear_upsample_matrix(h, k) @ _adaptive_avg_pool_matrix(h, k)
              for k in kernel_size] + [np.eye(h, dtype=np.float32)]
    sw_ops = [_bilinear_upsample_matrix(w, k) @ _adaptive_avg_pool_matrix(w, k)
              for k in kernel_size] + [np.eye(w, dtype=np.float32)]
    sht = jnp.asarray(np.concatenate([m.T for m in sh_ops], axis=1), jnp.bfloat16)  # (H, SS*H)
    swt = jnp.asarray(np.stack([m.T for m in sw_ops], axis=0), jnp.bfloat16)        # (SS, W, W)

    # Fold each stage's 1x1 conv (no bias) into its block of the bottleneck 1x1 conv.
    wc = params["conv_weight"]                                                        # (Cout, SS*C)
    wf = [wc[:, i * c:(i + 1) * c] @ params["stage_weights"][i] for i in range(s)]
    wf.append(wc[:, s * c:])                                                          # raw-x block
    wft = jnp.stack(wf, axis=0).astype(jnp.bfloat16)                                  # (SS, Cout, C)
    bias2d = params["conv_bias"].reshape(c_out, 1).astype(jnp.float32)

    # NCHW -> (C, B, W, H) -> (C, B*W, H): puts H on the lane axis for the H-mix matmul and
    # makes (channel-chunk, batch-tile) blocks rectangular.  Only full-tensor transpose in
    # the whole pipeline; output rearrangement below is cheap layout plumbing.
    x3d = jnp.transpose(x_nchw, (1, 0, 3, 2)).astype(jnp.bfloat16).reshape(c, b * w, h)

    grid = (b // bb, c // cc)      # reduction (channel-chunk) axis last, batch axis parallel
    out = pl.pallas_call(
        _make_psp_kernel(ss, c_out, cc, bb, h, w, g),
        out_shape=jax.ShapeDtypeStruct((c_out, b * hw), jnp.bfloat16),
        grid_spec=pltpu.PrefetchScalarGridSpec(
            num_scalar_prefetch=0,
            grid=grid,
            in_specs=[
                pl.BlockSpec((cc, bb * w, h), lambda i, j: (j, i, 0)),
                # sht/swt/bias are a few KiB and constant -> double-buffering them is
                # negligible; wft is streamed along the channel-chunk reduction axis.
                pl.BlockSpec((h, ss * h), lambda i, j: (0, 0)),
                pl.BlockSpec((ss, w, w), lambda i, j: (0, 0, 0)),
                pl.BlockSpec((ss, c_out, cc), lambda i, j: (0, 0, j)),
                pl.BlockSpec((c_out, 1), lambda i, j: (0, 0)),
            ],
            out_specs=pl.BlockSpec((c_out, bb * hw), lambda i, j: (0, i)),
            scratch_shapes=[
                pltpu.VMEM((cc, bb * hw), jnp.bfloat16),     # bf16 staging buffer (one branch)
                pltpu.VMEM((c_out, bb * hw), jnp.float32),   # f32 accumulator
            ],
        ),
        compiler_params=pltpu.CompilerParams(
            dimension_semantics=("parallel", "arbitrary"),
            # explicit budget; re-derive bb/cc so this stays <= ~48-56 MiB on v7x (64 MiB
            # VMEM) and can be raised towards ~100 MiB on v5e/v6e for larger tiles.
            vmem_limit_bytes=vmem_limit_mb * 1024 * 1024,
        ),
    )(x3d, sht, swt, wft, bias2d)

    # (Cout, B*H*W) -> NCHW; pure layout plumbing outside the kernel.
    out = out.reshape(c_out, b, h, w).transpose(1, 0, 2, 3)
    return out.astype(x_nchw.dtype)


# ----------------------------------------------------------------- pure-JAX reference (f32)
def psp_reference(x_nchw, params, kernel_size=(1, 2, 3, 6)):
    b, c, h, w = x_nchw.shape
    feats = []
    for k, wk in zip(kernel_size, params["stage_weights"]):
        A_h = jnp.asarray(_adaptive_avg_pool_matrix(h, k))
        A_w = jnp.asarray(_adaptive_avg_pool_matrix(w, k))
        L_h = jnp.asarray(_bilinear_upsample_matrix(h, k))
        L_w = jnp.asarray(_bilinear_upsample_matrix(w, k))
        pooled = jnp.einsum('ph,bchw,qw->bcpq', A_h, x_nchw, A_w)   # adaptive avg pool
        conv = jnp.einsum('oc,bcpq->bopq', wk, pooled)              # stage 1x1 conv
        up = jnp.einsum('hp,bopq,wq->bohw', L_h, conv, L_w)         # bilinear upsample
        feats.append(up)
    feats.append(x_nchw)
    cat = jnp.concatenate(feats, axis=1)
    out = jnp.einsum('oc,bchw->bohw', params["conv_weight"], cat)
    out = out + params["conv_bias"][None, :, None, None]
    return jnp.maximum(out, 0.0)


# ----------------------------------------------------------------- params
def init_params(key, in_channels, out_channels, kernel_size=(1, 2, 3, 6)):
    n = len(kernel_size)
    keys = jax.random.split(key, n + 2)
    stage_weights = [
        0.1 * jax.random.normal(keys[i], (in_channels, in_channels), jnp.float32)
        for i in range(n)
    ]
    conv_weight = 0.1 * jax.random.normal(
        keys[n], (out_channels, in_channels * (n + 1)), jnp.float32)   # (Cout, 5*Cin)
    conv_bias = 0.1 * jax.random.normal(keys[n + 1], (out_channels,), jnp.float32)
    return dict(stage_weights=stage_weights, conv_weight=conv_weight, conv_bias=conv_bias)


if __name__ == "__main__":
    key = jax.random.PRNGKey(0)
    kx, kp = jax.random.split(key)
    B, C, H, W = 2, 4, 16, 16
    C_OUT = 8

    x = jax.random.normal(kx, (B, C, H, W), jnp.float32)   # NCHW, like the torch module
    params = init_params(kp, C, C_OUT)

    out = psp_module_forward(x, params)
    out = jax.block_until_ready(out)

    ref = jax.block_until_ready(psp_reference(x, params))
    assert out.shape == (B, C_OUT, H, W)
    # bf16 matmul operands / bf16 output (f32 accumulation) -> loosened tolerance vs f32 ref.
    np.testing.assert_allclose(np.asarray(out), np.asarray(ref), rtol=2e-2, atol=2e-2)

    print("KERNEL_OK")
</pallas_src>

<mosaic_0001>
module attributes {stable_mosaic.version = 11 : i64} {
  func.func @kernel(%arg0: i32, %arg1: i32, %arg2: memref<4x16x16xbf16, #tpu.memory_space<vmem>>, %arg3: memref<16x80xbf16, #tpu.memory_space<vmem>>, %arg4: memref<5x16x16xbf16, #tpu.memory_space<vmem>>, %arg5: memref<5x8x4xbf16, #tpu.memory_space<vmem>>, %arg6: memref<8x1xf32, #tpu.memory_space<vmem>>, %arg7: memref<8x256xbf16, #tpu.memory_space<vmem>>, %arg8: memref<4x256xbf16, #tpu.memory_space<vmem>>, %arg9: memref<8x256xf32, #tpu.memory_space<vmem>>) attributes {dimension_semantics = [#tpu.dimension_semantics<parallel>, #tpu.dimension_semantics<arbitrary>], iteration_bounds = array<i64: 2, 1>, scalar_prefetch = 0 : i64, scratch_operands = 2 : i64, tpu.core_type = #tpu.core_type<tc>, window_params = [{transform_indices = @transform_0, window_bounds = array<i64: 4, 16, 16>}, {pipeline_mode = #tpu.pipeline_mode<synchronous>, transform_indices = @transform_1, window_bounds = array<i64: 16, 80>}, {pipeline_mode = #tpu.pipeline_mode<synchronous>, transform_indices = @transform_2, window_bounds = array<i64: 5, 16, 16>}, {transform_indices = @transform_3, window_bounds = array<i64: 5, 8, 4>}, {pipeline_mode = #tpu.pipeline_mode<synchronous>, transform_indices = @transform_4, window_bounds = array<i64: 8, 1>}, {transform_indices = @transform_5, window_bounds = array<i64: 8, 256>}]} {
    %c0_i32 = arith.constant 0 : i32
    %0 = arith.cmpi eq, %arg1, %c0_i32 : i32
    %1 = arith.extui %0 : i1 to i32
    %c0_i32_0 = arith.constant 0 : i32
    %2 = arith.cmpi ne, %1, %c0_i32_0 : i32
    scf.if %2 {
      %cst_83 = arith.constant 0.000000e+00 : f32
      %253 = vector.broadcast %cst_83 : f32 to vector<8x256xf32>
      %c0_84 = arith.constant 0 : index
      %c0_85 = arith.constant 0 : index
      %254 = vector.load %arg9[%c0_84, %c0_85] : memref<8x256xf32, #tpu.memory_space<vmem>>, vector<8x256xf32>
      tpu.vector_store %arg9[%c0_84, %c0_85], %253 {strides = array<i32>} : memref<8x256xf32, #tpu.memory_space<vmem>>, vector<8x256xf32>,
    } else {
    }
    %c0 = arith.constant 0 : index
    %c0_1 = arith.constant 0 : index
    %c0_2 = arith.constant 0 : index
    %3 = vector.load %arg2[%c0, %c0_1, %c0_2] : memref<4x16x16xbf16, #tpu.memory_space<vmem>>, vector<4x16x16xbf16>
    %4 = vector.shape_cast %3 : vector<4x16x16xbf16> to vector<64x16xbf16>
    %c0_3 = arith.constant 0 : index
    %c0_4 = arith.constant 0 : index
    %5 = vector.load %arg3[%c0_3, %c0_4] : memref<16x80xbf16, #tpu.memory_space<vmem>>, vector<16x80xbf16>
    %cst = arith.constant dense<0.000000e+00> : vector<64x80xf32>
    %6 = tpu.matmul %4, %5, %cst {dimension_numbers = #tpu.dot_dimension_numbers<[1], [0], [0], [1], [0, 0, 1, 1], [], []>} : vector<64x16xbf16>, vector<16x80xbf16>, vector<64x80xf32> -> vector<64x80xf32>
    %7 = arith.truncf %6 : vector<64x80xf32> to vector<64x80xbf16>
    %8 = vector.shape_cast %7 : vector<64x80xbf16> to vector<4x16x80xbf16>
    %9 = tpu.transpose %8, [0, 2, 1] : vector<4x16x80xbf16> -> vector<4x80x16xbf16>
    %10 = vector.extract_strided_slice %9 {offsets = [0, 0, 0], sizes = [4, 16, 16], strides = [1, 1, 1]} : vector<4x80x16xbf16> to vector<4x16x16xbf16>
    %11 = vector.shape_cast %10 : vector<4x16x16xbf16> to vector<64x16xbf16>
    %c0_5 = arith.constant 0 : index
    %c0_6 = arith.constant 0 : index
    %c0_7 = arith.constant 0 : index
    %12 = vector.load %arg4[%c0_5, %c0_6, %c0_7] : memref<5x16x16xbf16, #tpu.memory_space<vmem>>, vector<1x16x16xbf16>
    %13 = vector.shape_cast %12 : vector<1x16x16xbf16> to vector<16x16xbf16>
    %cst_8 = arith.constant dense<0.000000e+00> : vector<64x16xf32>
    %14 = tpu.matmul %11, %13, %cst_8 {dimension_numbers = #tpu.dot_dimension_numbers<[1], [0], [0], [1], [0, 0, 1, 1], [], []>} : vector<64x16xbf16>, vector<16x16xbf16>, vector<64x16xf32> -> vector<64x16xf32>
    %15 = vector.shape_cast %14 : vector<64x16xf32> to vector<4x1x16x16xf32>
    %16 = vector.extract_strided_slice %15 {offsets = [0, 0, 0, 0], sizes = [4, 1, 1, 16], strides = [1, 1, 1, 1]} : vector<4x1x16x16xf32> to vector<4x1x1x16xf32>
    %17 = vector.shape_cast %16 : vector<4x1x1x16xf32> to vector<4x16xf32>
    %18 = vector.extract_strided_slice %15 {offsets = [0, 0, 1, 0], sizes = [4, 1, 1, 16], strides = [1, 1, 1, 1]} : vector<4x1x16x16xf32> to vector<4x1x1x16xf32>
    %19 = vector.shape_cast %18 : vector<4x1x1x16xf32> to vector<4x16xf32>
    %20 = vector.extract_strided_slice %15 {offsets = [0, 0, 2, 0], sizes = [4, 1, 1, 16], strides = [1, 1, 1, 1]} : vector<4x1x16x16xf32> to vector<4x1x1x16xf32>
    %21 = vector.shape_cast %20 : vector<4x1x1x16xf32> to vector<4x16xf32>
    %22 = vector.extract_strided_slice %15 {offsets = [0, 0, 3, 0], sizes = [4, 1, 1, 16], strides = [1, 1, 1, 1]} : vector<4x1x16x16xf32> to vector<4x1x1x16xf32>
    %23 = vector.shape_cast %22 : vector<4x1x1x16xf32> to vector<4x16xf32>
    %24 = vector.extract_strided_slice %15 {offsets = [0, 0, 4, 0], sizes = [4, 1, 1, 16], strides = [1, 1, 1, 1]} : vector<4x1x16x16xf32> to vector<4x1x1x16xf32>
    %25 = vector.shape_cast %24 : vector<4x1x1x16xf32> to vector<4x16xf32>
    %26 = vector.extract_strided_slice %15 {offsets = [0, 0, 5, 0], sizes = [4, 1, 1, 16], strides = [1, 1, 1, 1]} : vector<4x1x16x16xf32> to vector<4x1x1x16xf32>
    %27 = vector.shape_cast %26 : vector<4x1x1x16xf32> to vector<4x16xf32>
    %28 = vector.extract_strided_slice %15 {offsets = [0, 0, 6, 0], sizes = [4, 1, 1, 16], strides = [1, 1, 1, 1]} : vector<4x1x16x16xf32> to vector<4x1x1x16xf32>
    %29 = vector.shape_cast %28 : vector<4x1x1x16xf32> to vector<4x16xf32>
    %30 = vector.extract_strided_slice %15 {offsets = [0, 0, 7, 0], sizes = [4, 1, 1, 16], strides = [1, 1, 1, 1]} : vector<4x1x16x16xf32> to vector<4x1x1x16xf32>
    %31 = vector.shape_cast %30 : vector<4x1x1x16xf32> to vector<4x16xf32>
    %32 = vector.extract_strided_slice %15 {offsets = [0, 0, 8, 0], sizes = [4, 1, 1, 16], strides = [1, 1, 1, 1]} : vector<4x1x16x16xf32> to vector<4x1x1x16xf32>
    %33 = vector.shape_cast %32 : vector<4x1x1x16xf32> to vector<4x16xf32>
    %34 = vector.extract_strided_slice %15 {offsets = [0, 0, 9, 0], sizes = [4, 1, 1, 16], strides = [1, 1, 1, 1]} : vector<4x1x16x16xf32> to vector<4x1x1x16xf32>
    %35 = vector.shape_cast %34 : vector<4x1x1x16xf32> to vector<4x16xf32>
    %36 = vector.extract_strided_slice %15 {offsets = [0, 0, 10, 0], sizes = [4, 1, 1, 16], strides = [1, 1, 1, 1]} : vector<4x1x16x16xf32> to vector<4x1x1x16xf32>
    %37 = vector.shape_cast %36 : vector<4x1x1x16xf32> to vector<4x16xf32>
    %38 = vector.extract_strided_slice %15 {offsets = [0, 0, 11, 0], sizes = [4, 1, 1, 16], strides = [1, 1, 1, 1]} : vector<4x1x16x16xf32> to vector<4x1x1x16xf32>
    %39 = vector.shape_cast %38 : vector<4x1x1x16xf32> to vector<4x16xf32>
    %40 = vector.extract_strided_slice %15 {offsets = [0, 0, 12, 0], sizes = [4, 1, 1, 16], strides = [1, 1, 1, 1]} : vector<4x1x16x16xf32> to vector<4x1x1x16xf32>
    %41 = vector.shape_cast %40 : vector<4x1x1x16xf32> to vector<4x16xf32>
    %42 = vector.extract_strided_slice %15 {offsets = [0, 0, 13, 0], sizes = [4, 1, 1, 16], strides = [1, 1, 1, 1]} : vector<4x1x16x16xf32> to vector<4x1x1x16xf32>
    %43 = vector.shape_cast %42 : vector<4x1x1x16xf32> to vector<4x16xf32>
    %44 = vector.extract_strided_slice %15 {offsets = [0, 0, 14, 0], sizes = [4, 1, 1, 16], strides = [1, 1, 1, 1]} : vector<4x1x16x16xf32> to vector<4x1x1x16xf32>
    %45 = vector.shape_cast %44 : vector<4x1x1x16xf32> to vector<4x16xf32>
    %46 = vector.extract_strided_slice %15 {offsets = [0, 0, 15, 0], sizes = [4, 1, 1, 16], strides = [1, 1, 1, 1]} : vector<4x1x16x16xf32> to vector<4x1x1x16xf32>
    %47 = vector.shape_cast %46 : vector<4x1x1x16xf32> to vector<4x16xf32>
    %48 = tpu.concatenate %17, %19, %21, %23, %25, %27, %29, %31, %33, %35, %37, %39, %41, %43, %45, %47 in 1 : vector<4x16xf32>, vector<4x16xf32>, vector<4x16xf32>, vector<4x16xf32>, vector<4x16xf32>, vector<4x16xf32>, vector<4x16xf32>, vector<4x16xf32>, vector<4x16xf32>, vector<4x16xf32>, vector<4x16xf32>, vector<4x16xf32>, vector<4x16xf32>, vector<4x16xf32>, vector<4x16xf32>, vector<4x16xf32> -> vector<4x256xf32>
    %49 = arith.truncf %48 : vector<4x256xf32> to vector<4x256xbf16>
    %c0_9 = arith.constant 0 : index
    %c0_10 = arith.constant 0 : index
    %50 = vector.load %arg8[%c0_9, %c0_10] : memref<4x256xbf16, #tpu.memory_space<vmem>>, vector<4x256xbf16>
    tpu.vector_store %arg8[%c0_9, %c0_10], %49 {strides = array<i32>} : memref<4x256xbf16, #tpu.memory_space<vmem>>, vector<4x256xbf16>,
    %c0_11 = arith.constant 0 : index
    %c0_12 = arith.constant 0 : index
    %51 = vector.load %arg9[%c0_11, %c0_12] : memref<8x256xf32, #tpu.memory_space<vmem>>, vector<8x256xf32>
    %c0_13 = arith.constant 0 : index
    %c0_14 = arith.constant 0 : index
    %c0_15 = arith.constant 0 : index
    %52 = vector.load %arg5[%c0_13, %c0_14, %c0_15] : memref<5x8x4xbf16, #tpu.memory_space<vmem>>, vector<1x8x4xbf16>
    %53 = vector.shape_cast %52 : vector<1x8x4xbf16> to vector<8x4xbf16>
    %c0_16 = arith.constant 0 : index
    %c0_17 = arith.constant 0 : index
    %54 = vector.load %arg8[%c0_16, %c0_17] : memref<4x256xbf16, #tpu.memory_space<vmem>>, vector<4x256xbf16>
    %cst_18 = arith.constant dense<0.000000e+00> : vector<8x256xf32>
    %55 = tpu.matmul %53, %54, %cst_18 {dimension_numbers = #tpu.dot_dimension_numbers<[1], [0], [0], [1], [0, 0, 1, 1], [], []>} : vector<8x4xbf16>, vector<4x256xbf16>, vector<8x256xf32> -> vector<8x256xf32>
    %56 = arith.addf %51, %55 : vector<8x256xf32>
    %c0_19 = arith.constant 0 : index
    %c0_20 = arith.constant 0 : index
    %57 = vector.load %arg9[%c0_19, %c0_20] : memref<8x256xf32, #tpu.memory_space<vmem>>, vector<8x256xf32>
    tpu.vector_store %arg9[%c0_19, %c0_20], %56 {strides = array<i32>} : memref<8x256xf32, #tpu.memory_space<vmem>>, vector<8x256xf32>,
    %58 = vector.extract_strided_slice %9 {offsets = [0, 16, 0], sizes = [4, 16, 16], strides = [1, 1, 1]} : vector<4x80x16xbf16> to vector<4x16x16xbf16>
    %59 = vector.shape_cast %58 : vector<4x16x16xbf16> to vector<64x16xbf16>
    %c1 = arith.constant 1 : index
    %c0_21 = arith.constant 0 : index
    %c0_22 = arith.constant 0 : index
    %60 = vector.load %arg4[%c1, %c0_21, %c0_22] : memref<5x16x16xbf16, #tpu.memory_space<vmem>>, vector<1x16x16xbf16>
    %61 = vector.shape_cast %60 : vector<1x16x16xbf16> to vector<16x16xbf16>
    %cst_23 = arith.constant dense<0.000000e+00> : vector<64x16xf32>
    %62 = tpu.matmul %59, %61, %cst_23 {dimension_numbers = #tpu.dot_dimension_numbers<[1], [0], [0], [1], [0, 0, 1, 1], [], []>} : vector<64x16xbf16>, vector<16x16xbf16>, vector<64x16xf32> -> vector<64x16xf32>
    %63 = vector.shape_cast %62 : vector<64x16xf32> to vector<4x1x16x16xf32>
    %64 = vector.extract_strided_slice %63 {offsets = [0, 0, 0, 0], sizes = [4, 1, 1, 16], strides = [1, 1, 1, 1]} : vector<4x1x16x16xf32> to vector<4x1x1x16xf32>
    %65 = vector.shape_cast %64 : vector<4x1x1x16xf32> to vector<4x16xf32>
    %66 = vector.extract_strided_slice %63 {offsets = [0, 0, 1, 0], sizes = [4, 1, 1, 16], strides = [1, 1, 1, 1]} : vector<4x1x16x16xf32> to vector<4x1x1x16xf32>
    %67 = vector.shape_cast %66 : vector<4x1x1x16xf32> to vector<4x16xf32>
    %68 = vector.extract_strided_slice %63 {offsets = [0, 0, 2, 0], sizes = [4, 1, 1, 16], strides = [1, 1, 1, 1]} : vector<4x1x16x16xf32> to vector<4x1x1x16xf32>
    %69 = vector.shape_cast %68 : vector<4x1x1x16xf32> to vector<4x16xf32>
    %70 = vector.extract_strided_slice %63 {offsets = [0, 0, 3, 0], sizes = [4, 1, 1, 16], strides = [1, 1, 1, 1]} : vector<4x1x16x16xf32> to vector<4x1x1x16xf32>
    %71 = vector.shape_cast %70 : vector<4x1x1x16xf32> to vector<4x16xf32>
    %72 = vector.extract_strided_slice %63 {offsets = [0, 0, 4, 0], sizes = [4, 1, 1, 16], strides = [1, 1, 1, 1]} : vector<4x1x16x16xf32> to vector<4x1x1x16xf32>
    %73 = vector.shape_cast %72 : vector<4x1x1x16xf32> to vector<4x16xf32>
    %74 = vector.extract_strided_slice %63 {offsets = [0, 0, 5, 0], sizes = [4, 1, 1, 16], strides = [1, 1, 1, 1]} : vector<4x1x16x16xf32> to vector<4x1x1x16xf32>
    %75 = vector.shape_cast %74 : vector<4x1x1x16xf32> to vector<4x16xf32>
    %76 = vector.extract_strided_slice %63 {offsets = [0, 0, 6, 0], sizes = [4, 1, 1, 16], strides = [1, 1, 1, 1]} : vector<4x1x16x16xf32> to vector<4x1x1x16xf32>
    %77 = vector.shape_cast %76 : vector<4x1x1x16xf32> to vector<4x16xf32>
    %78 = vector.extract_strided_slice %63 {offsets = [0, 0, 7, 0], sizes = [4, 1, 1, 16], strides = [1, 1, 1, 1]} : vector<4x1x16x16xf32> to vector<4x1x1x16xf32>
    %79 = vector.shape_cast %78 : vector<4x1x1x16xf32> to vector<4x16xf32>
    %80 = vector.extract_strided_slice %63 {offsets = [0, 0, 8, 0], sizes = [4, 1, 1, 16], strides = [1, 1, 1, 1]} : vector<4x1x16x16xf32> to vector<4x1x1x16xf32>
    %81 = vector.shape_cast %80 : vector<4x1x1x16xf32> to vector<4x16xf32>
    %82 = vector.extract_strided_slice %63 {offsets = [0, 0, 9, 0], sizes = [4, 1, 1, 16], strides = [1, 1, 1, 1]} : vector<4x1x16x16xf32> to vector<4x1x1x16xf32>
    %83 = vector.shape_cast %82 : vector<4x1x1x16xf32> to vector<4x16xf32>
    %84 = vector.extract_strided_slice %63 {offsets = [0, 0, 10, 0], sizes = [4, 1, 1, 16], strides = [1, 1, 1, 1]} : vector<4x1x16x16xf32> to vector<4x1x1x16xf32>
    %85 = vector.shape_cast %84 : vector<4x1x1x16xf32> to vector<4x16xf32>
    %86 = vector.extract_strided_slice %63 {offsets = [0, 0, 11, 0], sizes = [4, 1, 1, 16], strides = [1, 1, 1, 1]} : vector<4x1x16x16xf32> to vector<4x1x1x16xf32>
    %87 = vector.shape_cast %86 : vector<4x1x1x16xf32> to vector<4x16xf32>
    %88 = vector.extract_strided_slice %63 {offsets = [0, 0, 12, 0], sizes = [4, 1, 1, 16], strides = [1, 1, 1, 1]} : vector<4x1x16x16xf32> to vector<4x1x1x16xf32>
    %89 = vector.shape_cast %88 : vector<4x1x1x16xf32> to vector<4x16xf32>
    %90 = vector.extract_strided_slice %63 {offsets = [0, 0, 13, 0], sizes = [4, 1, 1, 16], strides = [1, 1, 1, 1]} : vector<4x1x16x16xf32> to vector<4x1x1x16xf32>
    %91 = vector.shape_cast %90 : vector<4x1x1x16xf32> to vector<4x16xf32>
    %92 = vector.extract_strided_slice %63 {offsets = [0, 0, 14, 0], sizes = [4, 1, 1, 16], strides = [1, 1, 1, 1]} : vector<4x1x16x16xf32> to vector<4x1x1x16xf32>
    %93 = vector.shape_cast %92 : vector<4x1x1x16xf32> to vector<4x16xf32>
    %94 = vector.extract_strided_slice %63 {offsets = [0, 0, 15, 0], sizes = [4, 1, 1, 16], strides = [1, 1, 1, 1]} : vector<4x1x16x16xf32> to vector<4x1x1x16xf32>
    %95 = vector.shape_cast %94 : vector<4x1x1x16xf32> to vector<4x16xf32>
    %96 = tpu.concatenate %65, %67, %69, %71, %73, %75, %77, %79, %81, %83, %85, %87, %89, %91, %93, %95 in 1 : vector<4x16xf32>, vector<4x16xf32>, vector<4x16xf32>, vector<4x16xf32>, vector<4x16xf32>, vector<4x16xf32>, vector<4x16xf32>, vector<4x16xf32>, vector<4x16xf32>, vector<4x16xf32>, vector<4x16xf32>, vector<4x16xf32>, vector<4x16xf32>, vector<4x16xf32>, vector<4x16xf32>, vector<4x16xf32> -> vector<4x256xf32>
    %97 = arith.truncf %96 : vector<4x256xf32> to vector<4x256xbf16>
    %c0_24 = arith.constant 0 : index
    %c0_25 = arith.constant 0 : index
    %98 = vector.load %arg8[%c0_24, %c0_25] : memref<4x256xbf16, #tpu.memory_space<vmem>>, vector<4x256xbf16>
    tpu.vector_store %arg8[%c0_24, %c0_25], %97 {strides = array<i32>} : memref<4x256xbf16, #tpu.memory_space<vmem>>, vector<4x256xbf16>,
    %c0_26 = arith.constant 0 : index
    %c0_27 = arith.constant 0 : index
    %99 = vector.load %arg9[%c0_26, %c0_27] : memref<8x256xf32, #tpu.memory_space<vmem>>, vector<8x256xf32>
    %c1_28 = arith.constant 1 : index
    %c0_29 = arith.constant 0 : index
    %c0_30 = arith.constant 0 : index
    %100 = vector.load %arg5[%c1_28, %c0_29, %c0_30] : memref<5x8x4xbf16, #tpu.memory_space<vmem>>, vector<1x8x4xbf16>
    %101 = vector.shape_cast %100 : vector<1x8x4xbf16> to vector<8x4xbf16>
    %c0_31 = arith.constant 0 : index
    %c0_32 = arith.constant 0 : index
    %102 = vector.load %arg8[%c0_31, %c0_32] : memref<4x256xbf16, #tpu.memory_space<vmem>>, vector<4x256xbf16>
    %cst_33 = arith.constant dense<0.000000e+00> : vector<8x256xf32>
    %103 = tpu.matmul %101, %102, %cst_33 {dimension_numbers = #tpu.dot_dimension_numbers<[1], [0], [0], [1], [0, 0, 1, 1], [], []>} : vector<8x4xbf16>, vector<4x256xbf16>, vector<8x256xf32> -> vector<8x256xf32>
    %104 = arith.addf %99, %103 : vector<8x256xf32>
    %c0_34 = arith.constant 0 : index
    %c0_35 = arith.constant 0 : index
    %105 = vector.load %arg9[%c0_34, %c0_35] : memref<8x256xf32, #tpu.memory_space<vmem>>, vector<8x256xf32>
    tpu.vector_store %arg9[%c0_34, %c0_35], %104 {strides = array<i32>} : memref<8x256xf32, #tpu.memory_space<vmem>>, vector<8x256xf32>,
    %106 = vector.extract_strided_slice %9 {offsets = [0, 32, 0], sizes = [4, 16, 16], strides = [1, 1, 1]} : vector<4x80x16xbf16> to vector<4x16x16xbf16>
    %107 = vector.shape_cast %106 : vector<4x16x16xbf16> to vector<64x16xbf16>
    %c2 = arith.constant 2 : index
    %c0_36 = arith.constant 0 : index
    %c0_37 = arith.constant 0 : index
    %108 = vector.load %arg4[%c2, %c0_36, %c0_37] : memref<5x16x16xbf16, #tpu.memory_space<vmem>>, vector<1x16x16xbf16>
    %109 = vector.shape_cast %108 : vector<1x16x16xbf16> to vector<16x16xbf16>
    %cst_38 = arith.constant dense<0.000000e+00> : vector<64x16xf32>
    %110 = tpu.matmul %107, %109, %cst_38 {dimension_numbers = #tpu.dot_dimension_numbers<[1], [0], [0], [1], [0, 0, 1, 1], [], []>} : vector<64x16xbf16>, vector<16x16xbf16>, vector<64x16xf32> -> vector<64x16xf32>
    %111 = vector.shape_cast %110 : vector<64x16xf32> to vector<4x1x16x16xf32>
    %112 = vector.extract_strided_slice %111 {offsets = [0, 0, 0, 0], sizes = [4, 1, 1, 16], strides = [1, 1, 1, 1]} : vector<4x1x16x16xf32> to vector<4x1x1x16xf32>
    %113 = vector.shape_cast %112 : vector<4x1x1x16xf32> to vector<4x16xf32>
    %114 = vector.extract_strided_slice %111 {offsets = [0, 0, 1, 0], sizes = [4, 1, 1, 16], strides = [1, 1, 1, 1]} : vector<4x1x16x16xf32> to vector<4x1x1x16xf32>
    %115 = vector.shape_cast %114 : vector<4x1x1x16xf32> to vector<4x16xf32>
    %116 = vector.extract_strided_slice %111 {offsets = [0, 0, 2, 0], sizes = [4, 1, 1, 16], strides = [1, 1, 1, 1]} : vector<4x1x16x16xf32> to vector<4x1x1x16xf32>
    %117 = vector.shape_cast %116 : vector<4x1x1x16xf32> to vector<4x16xf32>
    %118 = vector.extract_strided_slice %111 {offsets = [0, 0, 3, 0], sizes = [4, 1, 1, 16], strides = [1, 1, 1, 1]} : vector<4x1x16x16xf32> to vector<4x1x1x16xf32>
    %119 = vector.shape_cast %118 : vector<4x1x1x16xf32> to vector<4x16xf32>
    %120 = vector.extract_strided_slice %111 {offsets = [0, 0, 4, 0], sizes = [4, 1, 1, 16], strides = [1, 1, 1, 1]} : vector<4x1x16x16xf32> to vector<4x1x1x16xf32>
    %121 = vector.shape_cast %120 : vector<4x1x1x16xf32> to vector<4x16xf32>
    %122 = vector.extract_strided_slice %111 {offsets = [0, 0, 5, 0], sizes = [4, 1, 1, 16], strides = [1, 1, 1, 1]} : vector<4x1x16x16xf32> to vector<4x1x1x16xf32>
    %123 = vector.shape_cast %122 : vector<4x1x1x16xf32> to vector<4x16xf32>
    %124 = vector.extract_strided_slice %111 {offsets = [0, 0, 6, 0], sizes = [4, 1, 1, 16], strides = [1, 1, 1, 1]} : vector<4x1x16x16xf32> to vector<4x1x1x16xf32>
    %125 = vector.shape_cast %124 : vector<4x1x1x16xf32> to vector<4x16xf32>
    %126 = vector.extract_strided_slice %111 {offsets = [0, 0, 7, 0], sizes = [4, 1, 1, 16], strides = [1, 1, 1, 1]} : vector<4x1x16x16xf32> to vector<4x1x1x16xf32>
    %127 = vector.shape_cast %126 : vector<4x1x1x16xf32> to vector<4x16xf32>
    %128 = vector.extract_strided_slice %111 {offsets = [0, 0, 8, 0], sizes = [4, 1, 1, 16], strides = [1, 1, 1, 1]} : vector<4x1x16x16xf32> to vector<4x1x1x16xf32>
    %129 = vector.shape_cast %128 : vector<4x1x1x16xf32> to vector<4x16xf32>
    %130 = vector.extract_strided_slice %111 {offsets = [0, 0, 9, 0], sizes = [4, 1, 1, 16], strides = [1, 1, 1, 1]} : vector<4x1x16x16xf32> to vector<4x1x1x16xf32>
    %131 = vector.shape_cast %130 : vector<4x1x1x16xf32> to vector<4x16xf32>
    %132 = vector.extract_strided_slice %111 {offsets = [0, 0, 10, 0], sizes = [4, 1, 1, 16], strides = [1, 1, 1, 1]} : vector<4x1x16x16xf32> to vector<4x1x1x16xf32>
    %133 = vector.shape_cast %132 : vector<4x1x1x16xf32> to vector<4x16xf32>
    %134 = vector.extract_strided_slice %111 {offsets = [0, 0, 11, 0], sizes = [4, 1, 1, 16], strides = [1, 1, 1, 1]} : vector<4x1x16x16xf32> to vector<4x1x1x16xf32>
    %135 = vector.shape_cast %134 : vector<4x1x1x16xf32> to vector<4x16xf32>
    %136 = vector.extract_strided_slice %111 {offsets = [0, 0, 12, 0], sizes = [4, 1, 1, 16], strides = [1, 1, 1, 1]} : vector<4x1x16x16xf32> to vector<4x1x1x16xf32>
    %137 = vector.shape_cast %136 : vector<4x1x1x16xf32> to vector<4x16xf32>
    %138 = vector.extract_strided_slice %111 {offsets = [0, 0, 13, 0], sizes = [4, 1, 1, 16], strides = [1, 1, 1, 1]} : vector<4x1x16x16xf32> to vector<4x1x1x16xf32>
    %139 = vector.shape_cast %138 : vector<4x1x1x16xf32> to vector<4x16xf32>
    %140 = vector.extract_strided_slice %111 {offsets = [0, 0, 14, 0], sizes = [4, 1, 1, 16], strides = [1, 1, 1, 1]} : vector<4x1x16x16xf32> to vector<4x1x1x16xf32>
    %141 = vector.shape_cast %140 : vector<4x1x1x16xf32> to vector<4x16xf32>
    %142 = vector.extract_strided_slice %111 {offsets = [0, 0, 15, 0], sizes = [4, 1, 1, 16], strides = [1, 1, 1, 1]} : vector<4x1x16x16xf32> to vector<4x1x1x16xf32>
    %143 = vector.shape_cast %142 : vector<4x1x1x16xf32> to vector<4x16xf32>
    %144 = tpu.concatenate %113, %115, %117, %119, %121, %123, %125, %127, %129, %131, %133, %135, %137, %139, %141, %143 in 1 : vector<4x16xf32>, vector<4x16xf32>, vector<4x16xf32>, vector<4x16xf32>, vector<4x16xf32>, vector<4x16xf32>, vector<4x16xf32>, vector<4x16xf32>, vector<4x16xf32>, vector<4x16xf32>, vector<4x16xf32>, vector<4x16xf32>, vector<4x16xf32>, vector<4x16xf32>, vector<4x16xf32>, vector<4x16xf32> -> vector<4x256xf32>
    %145 = arith.truncf %144 : vector<4x256xf32> to vector<4x256xbf16>
    %c0_39 = arith.constant 0 : index
    %c0_40 = arith.constant 0 : index
    %146 = vector.load %arg8[%c0_39, %c0_40] : memref<4x256xbf16, #tpu.memory_space<vmem>>, vector<4x256xbf16>
    tpu.vector_store %arg8[%c0_39, %c0_40], %145 {strides = array<i32>} : memref<4x256xbf16, #tpu.memory_space<vmem>>, vector<4x256xbf16>,
    %c0_41 = arith.constant 0 : index
    %c0_42 = arith.constant 0 : index
    %147 = vector.load %arg9[%c0_41, %c0_42] : memref<8x256xf32, #tpu.memory_space<vmem>>, vector<8x256xf32>
    %c2_43 = arith.constant 2 : index
    %c0_44 = arith.constant 0 : index
    %c0_45 = arith.constant 0 : index
    %148 = vector.load %arg5[%c2_43, %c0_44, %c0_45] : memref<5x8x4xbf16, #tpu.memory_space<vmem>>, vector<1x8x4xbf16>
    %149 = vector.shape_cast %148 : vector<1x8x4xbf16> to vector<8x4xbf16>
    %c0_46 = arith.constant 0 : index
    %c0_47 = arith.constant 0 : index
    %150 = vector.load %arg8[%c0_46, %c0_47] : memref<4x256xbf16, #tpu.memory_space<vmem>>, vector<4x256xbf16>
    %cst_48 = arith.constant dense<0.000000e+00> : vector<8x256xf32>
    %151 = tpu.matmul %149, %150, %cst_48 {dimension_numbers = #tpu.dot_dimension_numbers<[1], [0], [0], [1], [0, 0, 1, 1], [], []>} : vector<8x4xbf16>, vector<4x256xbf16>, vector<8x256xf32> -> vector<8x256xf32>
    %152 = arith.addf %147, %151 : vector<8x256xf32>
    %c0_49 = arith.constant 0 : index
    %c0_50 = arith.constant 0 : index
    %153 = vector.load %arg9[%c0_49, %c0_50] : memref<8x256xf32, #tpu.memory_space<vmem>>, vector<8x256xf32>
    tpu.vector_store %arg9[%c0_49, %c0_50], %152 {strides = array<i32>} : memref<8x256xf32, #tpu.memory_space<vmem>>, vector<8x256xf32>,
    %154 = vector.extract_strided_slice %9 {offsets = [0, 48, 0], sizes = [4, 16, 16], strides = [1, 1, 1]} : vector<4x80x16xbf16> to vector<4x16x16xbf16>
    %155 = vector.shape_cast %154 : vector<4x16x16xbf16> to vector<64x16xbf16>
    %c3 = arith.constant 3 : index
    %c0_51 = arith.constant 0 : index
    %c0_52 = arith.constant 0 : index
    %156 = vector.load %arg4[%c3, %c0_51, %c0_52] : memref<5x16x16xbf16, #tpu.memory_space<vmem>>, vector<1x16x16xbf16>
    %157 = vector.shape_cast %156 : vector<1x16x16xbf16> to vector<16x16xbf16>
    %cst_53 = arith.constant dense<0.000000e+00> : vector<64x16xf32>
    %158 = tpu.matmul %155, %157, %cst_53 {dimension_numbers = #tpu.dot_dimension_numbers<[1], [0], [0], [1], [0, 0, 1, 1], [], []>} : vector<64x16xbf16>, vector<16x16xbf16>, vector<64x16xf32> -> vector<64x16xf32>
    %159 = vector.shape_cast %158 : vector<64x16xf32> to vector<4x1x16x16xf32>
    %160 = vector.extract_strided_slice %159 {offsets = [0, 0, 0, 0], sizes = [4, 1, 1, 16], strides = [1, 1, 1, 1]} : vector<4x1x16x16xf32> to vector<4x1x1x16xf32>
    %161 = vector.shape_cast %160 : vector<4x1x1x16xf32> to vector<4x16xf32>
    %162 = vector.extract_strided_slice %159 {offsets = [0, 0, 1, 0], sizes = [4, 1, 1, 16], strides = [1, 1, 1, 1]} : vector<4x1x16x16xf32> to vector<4x1x1x16xf32>
    %163 = vector.shape_cast %162 : vector<4x1x1x16xf32> to vector<4x16xf32>
    %164 = vector.extract_strided_slice %159 {offsets = [0, 0, 2, 0], sizes = [4, 1, 1, 16], strides = [1, 1, 1, 1]} : vector<4x1x16x16xf32> to vector<4x1x1x16xf32>
    %165 = vector.shape_cast %164 : vector<4x1x1x16xf32> to vector<4x16xf32>
    %166 = vector.extract_strided_slice %159 {offsets = [0, 0, 3, 0], sizes = [4, 1, 1, 16], strides = [1, 1, 1, 1]} : vector<4x1x16x16xf32> to vector<4x1x1x16xf32>
    %167 = vector.shape_cast %166 : vector<4x1x1x16xf32> to vector<4x16xf32>
    %168 = vector.extract_strided_slice %159 {offsets = [0, 0, 4, 0], sizes = [4, 1, 1, 16], strides = [1, 1, 1, 1]} : vector<4x1x16x16xf32> to vector<4x1x1x16xf32>
    %169 = vector.shape_cast %168 : vector<4x1x1x16xf32> to vector<4x16xf32>
    %170 = vector.extract_strided_slice %159 {offsets = [0, 0, 5, 0], sizes = [4, 1, 1, 16], strides = [1, 1, 1, 1]} : vector<4x1x16x16xf32> to vector<4x1x1x16xf32>
    %171 = vector.shape_cast %170 : vector<4x1x1x16xf32> to vector<4x16xf32>
    %172 = vector.extract_strided_slice %159 {offsets = [0, 0, 6, 0], sizes = [4, 1, 1, 16], strides = [1, 1, 1, 1]} : vector<4x1x16x16xf32> to vector<4x1x1x16xf32>
    %173 = vector.shape_cast %172 : vector<4x1x1x16xf32> to vector<4x16xf32>
    %174 = vector.extract_strided_slice %159 {offsets = [0, 0, 7, 0], sizes = [4, 1, 1, 16], strides = [1, 1, 1, 1]} : vector<4x1x16x16xf32> to vector<4x1x1x16xf32>
    %175 = vector.shape_cast %174 : vector<4x1x1x16xf32> to vector<4x16xf32>
    %176 = vector.extract_strided_slice %159 {offsets = [0, 0, 8, 0], sizes = [4, 1, 1, 16], strides = [1, 1, 1, 1]} : vector<4x1x16x16xf32> to vector<4x1x1x16xf32>
    %177 = vector.shape_cast %176 : vector<4x1x1x16xf32> to vector<4x16xf32>
    %178 = vector.extract_strided_slice %159 {offsets = [0, 0, 9, 0], sizes = [4, 1, 1, 16], strides = [1, 1, 1, 1]} : vector<4x1x16x16xf32> to vector<4x1x1x16xf32>
    %179 = vector.shape_cast %178 : vector<4x1x1x16xf32> to vector<4x16xf32>
    %180 = vector.extract_strided_slice %159 {offsets = [0, 0, 10, 0], sizes = [4, 1, 1, 16], strides = [1, 1, 1, 1]} : vector<4x1x16x16xf32> to vector<4x1x1x16xf32>
    %181 = vector.shape_cast %180 : vector<4x1x1x16xf32> to vector<4x16xf32>
    %182 = vector.extract_strided_slice %159 {offsets = [0, 0, 11, 0], sizes = [4, 1, 1, 16], strides = [1, 1, 1, 1]} : vector<4x1x16x16xf32> to vector<4x1x1x16xf32>
    %183 = vector.shape_cast %182 : vector<4x1x1x16xf32> to vector<4x16xf32>
    %184 = vector.extract_strided_slice %159 {offsets = [0, 0, 12, 0], sizes = [4, 1, 1, 16], strides = [1, 1, 1, 1]} : vector<4x1x16x16xf32> to vector<4x1x1x16xf32>
    %185 = vector.shape_cast %184 : vector<4x1x1x16xf32> to vector<4x16xf32>
    %186 = vector.extract_strided_slice %159 {offsets = [0, 0, 13, 0], sizes = [4, 1, 1, 16], strides = [1, 1, 1, 1]} : vector<4x1x16x16xf32> to vector<4x1x1x16xf32>
    %187 = vector.shape_cast %186 : vector<4x1x1x16xf32> to vector<4x16xf32>
    %188 = vector.extract_strided_slice %159 {offsets = [0, 0, 14, 0], sizes = [4, 1, 1, 16], strides = [1, 1, 1, 1]} : vector<4x1x16x16xf32> to vector<4x1x1x16xf32>
    %189 = vector.shape_cast %188 : vector<4x1x1x16xf32> to vector<4x16xf32>
    %190 = vector.extract_strided_slice %159 {offsets = [0, 0, 15, 0], sizes = [4, 1, 1, 16], strides = [1, 1, 1, 1]} : vector<4x1x16x16xf32> to vector<4x1x1x16xf32>
    %191 = vector.shape_cast %190 : vector<4x1x1x16xf32> to vector<4x16xf32>
    %192 = tpu.concatenate %161, %163, %165, %167, %169, %171, %173, %175, %177, %179, %181, %183, %185, %187, %189, %191 in 1 : vector<4x16xf32>, vector<4x16xf32>, vector<4x16xf32>, vector<4x16xf32>, vector<4x16xf32>, vector<4x16xf32>, vector<4x16xf32>, vector<4x16xf32>, vector<4x16xf32>, vector<4x16xf32>, vector<4x16xf32>, vector<4x16xf32>, vector<4x16xf32>, vector<4x16xf32>, vector<4x16xf32>, vector<4x16xf32> -> vector<4x256xf32>
    %193 = arith.truncf %192 : vector<4x256xf32> to vector<4x256xbf16>
    %c0_54 = arith.constant 0 : index
    %c0_55 = arith.constant 0 : index
    %194 = vector.load %arg8[%c0_54, %c0_55] : memref<4x256xbf16, #tpu.memory_space<vmem>>, vector<4x256xbf16>
    tpu.vector_store %arg8[%c0_54, %c0_55], %193 {strides = array<i32>} : memref<4x256xbf16, #tpu.memory_space<vmem>>, vector<4x256xbf16>,
    %c0_56 = arith.constant 0 : index
    %c0_57 = arith.constant 0 : index
    %195 = vector.load %arg9[%c0_56, %c0_57] : memref<8x256xf32, #tpu.memory_space<vmem>>, vector<8x256xf32>
    %c3_58 = arith.constant 3 : index
    %c0_59 = arith.constant 0 : index
    %c0_60 = arith.constant 0 : index
    %196 = vector.load %arg5[%c3_58, %c0_59, %c0_60] : memref<5x8x4xbf16, #tpu.memory_space<vmem>>, vector<1x8x4xbf16>
    %197 = vector.shape_cast %196 : vector<1x8x4xbf16> to vector<8x4xbf16>
    %c0_61 = arith.constant 0 : index
    %c0_62 = arith.constant 0 : index
    %198 = vector.load %arg8[%c0_61, %c0_62] : memref<4x256xbf16, #tpu.memory_space<vmem>>, vector<4x256xbf16>
    %cst_63 = arith.constant dense<0.000000e+00> : vector<8x256xf32>
    %199 = tpu.matmul %197, %198, %cst_63 {dimension_numbers = #tpu.dot_dimension_numbers<[1], [0], [0], [1], [0, 0, 1, 1], [], []>} : vector<8x4xbf16>, vector<4x256xbf16>, vector<8x256xf32> -> vector<8x256xf32>
    %200 = arith.addf %195, %199 : vector<8x256xf32>
    %c0_64 = arith.constant 0 : index
    %c0_65 = arith.constant 0 : index
    %201 = vector.load %arg9[%c0_64, %c0_65] : memref<8x256xf32, #tpu.memory_space<vmem>>, vector<8x256xf32>
    tpu.vector_store %arg9[%c0_64, %c0_65], %200 {strides = array<i32>} : memref<8x256xf32, #tpu.memory_space<vmem>>, vector<8x256xf32>,
    %202 = vector.extract_strided_slice %9 {offsets = [0, 64, 0], sizes = [4, 16, 16], strides = [1, 1, 1]} : vector<4x80x16xbf16> to vector<4x16x16xbf16>
    %203 = vector.shape_cast %202 : vector<4x16x16xbf16> to vector<64x16xbf16>
    %c4 = arith.constant 4 : index
    %c0_66 = arith.constant 0 : index
    %c0_67 = arith.constant 0 : index
    %204 = vector.load %arg4[%c4, %c0_66, %c0_67] : memref<5x16x16xbf16, #tpu.memory_space<vmem>>, vector<1x16x16xbf16>
    %205 = vector.shape_cast %204 : vector<1x16x16xbf16> to vector<16x16xbf16>
    %cst_68 = arith.constant dense<0.000000e+00> : vector<64x16xf32>
    %206 = tpu.matmul %203, %205, %cst_68 {dimension_numbers = #tpu.dot_dimension_numbers<[1], [0], [0], [1], [0, 0, 1, 1], [], []>} : vector<64x16xbf16>, vector<16x16xbf16>, vector<64x16xf32> -> vector<64x16xf32>
    %207 = vector.shape_cast %206 : vector<64x16xf32> to vector<4x1x16x16xf32>
    %208 = vector.extract_strided_slice %207 {offsets = [0, 0, 0, 0], sizes = [4, 1, 1, 16], strides = [1, 1, 1, 1]} : vector<4x1x16x16xf32> to vector<4x1x1x16xf32>
    %209 = vector.shape_cast %208 : vector<4x1x1x16xf32> to vector<4x16xf32>
    %210 = vector.extract_strided_slice %207 {offsets = [0, 0, 1, 0], sizes = [4, 1, 1, 16], strides = [1, 1, 1, 1]} : vector<4x1x16x16xf32> to vector<4x1x1x16xf32>
    %211 = vector.shape_cast %210 : vector<4x1x1x16xf32> to vector<4x16xf32>
    %212 = vector.extract_strided_slice %207 {offsets = [0, 0, 2, 0], sizes = [4, 1, 1, 16], strides = [1, 1, 1, 1]} : vector<4x1x16x16xf32> to vector<4x1x1x16xf32>
    %213 = vector.shape_cast %212 : vector<4x1x1x16xf32> to vector<4x16xf32>
    %214 = vector.extract_strided_slice %207 {offsets = [0, 0, 3, 0], sizes = [4, 1, 1, 16], strides = [1, 1, 1, 1]} : vector<4x1x16x16xf32> to vector<4x1x1x16xf32>
    %215 = vector.shape_cast %214 : vector<4x1x1x16xf32> to vector<4x16xf32>
    %216 = vector.extract_strided_slice %207 {offsets = [0, 0, 4, 0], sizes = [4, 1, 1, 16], strides = [1, 1, 1, 1]} : vector<4x1x16x16xf32> to vector<4x1x1x16xf32>
    %217 = vector.shape_cast %216 : vector<4x1x1x16xf32> to vector<4x16xf32>
    %218 = vector.extract_strided_slice %207 {offsets = [0, 0, 5, 0], sizes = [4, 1, 1, 16], strides = [1, 1, 1, 1]} : vector<4x1x16x16xf32> to vector<4x1x1x16xf32>
    %219 = vector.shape_cast %218 : vector<4x1x1x16xf32> to vector<4x16xf32>
    %220 = vector.extract_strided_slice %207 {offsets = [0, 0, 6, 0], sizes = [4, 1, 1, 16], strides = [1, 1, 1, 1]} : vector<4x1x16x16xf32> to vector<4x1x1x16xf32>
    %221 = vector.shape_cast %220 : vector<4x1x1x16xf32> to vector<4x16xf32>
    %222 = vector.extract_strided_slice %207 {offsets = [0, 0, 7, 0], sizes = [4, 1, 1, 16], strides = [1, 1, 1, 1]} : vector<4x1x16x16xf32> to vector<4x1x1x16xf32>
    %223 = vector.shape_cast %222 : vector<4x1x1x16xf32> to vector<4x16xf32>
    %224 = vector.extract_strided_slice %207 {offsets = [0, 0, 8, 0], sizes = [4, 1, 1, 16], strides = [1, 1, 1, 1]} : vector<4x1x16x16xf32> to vector<4x1x1x16xf32>
    %225 = vector.shape_cast %224 : vector<4x1x1x16xf32> to vector<4x16xf32>
    %226 = vector.extract_strided_slice %207 {offsets = [0, 0, 9, 0], sizes = [4, 1, 1, 16], strides = [1, 1, 1, 1]} : vector<4x1x16x16xf32> to vector<4x1x1x16xf32>
    %227 = vector.shape_cast %226 : vector<4x1x1x16xf32> to vector<4x16xf32>
    %228 = vector.extract_strided_slice %207 {offsets = [0, 0, 10, 0], sizes = [4, 1, 1, 16], strides = [1, 1, 1, 1]} : vector<4x1x16x16xf32> to vector<4x1x1x16xf32>
    %229 = vector.shape_cast %228 : vector<4x1x1x16xf32> to vector<4x16xf32>
    %230 = vector.extract_strided_slice %207 {offsets = [0, 0, 11, 0], sizes = [4, 1, 1, 16], strides = [1, 1, 1, 1]} : vector<4x1x16x16xf32> to vector<4x1x1x16xf32>
    %231 = vector.shape_cast %230 : vector<4x1x1x16xf32> to vector<4x16xf32>
    %232 = vector.extract_strided_slice %207 {offsets = [0, 0, 12, 0], sizes = [4, 1, 1, 16], strides = [1, 1, 1, 1]} : vector<4x1x16x16xf32> to vector<4x1x1x16xf32>
    %233 = vector.shape_cast %232 : vector<4x1x1x16xf32> to vector<4x16xf32>
    %234 = vector.extract_strided_slice %207 {offsets = [0, 0, 13, 0], sizes = [4, 1, 1, 16], strides = [1, 1, 1, 1]} : vector<4x1x16x16xf32> to vector<4x1x1x16xf32>
    %235 = vector.shape_cast %234 : vector<4x1x1x16xf32> to vector<4x16xf32>
    %236 = vector.extract_strided_slice %207 {offsets = [0, 0, 14, 0], sizes = [4, 1, 1, 16], strides = [1, 1, 1, 1]} : vector<4x1x16x16xf32> to vector<4x1x1x16xf32>
    %237 = vector.shape_cast %236 : vector<4x1x1x16xf32> to vector<4x16xf32>
    %238 = vector.extract_strided_slice %207 {offsets = [0, 0, 15, 0], sizes = [4, 1, 1, 16], strides = [1, 1, 1, 1]} : vector<4x1x16x16xf32> to vector<4x1x1x16xf32>
    %239 = vector.shape_cast %238 : vector<4x1x1x16xf32> to vector<4x16xf32>
    %240 = tpu.concatenate %209, %211, %213, %215, %217, %219, %221, %223, %225, %227, %229, %231, %233, %235, %237, %239 in 1 : vector<4x16xf32>, vector<4x16xf32>, vector<4x16xf32>, vector<4x16xf32>, vector<4x16xf32>, vector<4x16xf32>, vector<4x16xf32>, vector<4x16xf32>, vector<4x16xf32>, vector<4x16xf32>, vector<4x16xf32>, vector<4x16xf32>, vector<4x16xf32>, vector<4x16xf32>, vector<4x16xf32>, vector<4x16xf32> -> vector<4x256xf32>
    %241 = arith.truncf %240 : vector<4x256xf32> to vector<4x256xbf16>
    %c0_69 = arith.constant 0 : index
    %c0_70 = arith.constant 0 : index
    %242 = vector.load %arg8[%c0_69, %c0_70] : memref<4x256xbf16, #tpu.memory_space<vmem>>, vector<4x256xbf16>
    tpu.vector_store %arg8[%c0_69, %c0_70], %241 {strides = array<i32>} : memref<4x256xbf16, #tpu.memory_space<vmem>>, vector<4x256xbf16>,
    %c0_71 = arith.constant 0 : index
    %c0_72 = arith.constant 0 : index
    %243 = vector.load %arg9[%c0_71, %c0_72] : memref<8x256xf32, #tpu.memory_space<vmem>>, vector<8x256xf32>
    %c4_73 = arith.constant 4 : index
    %c0_74 = arith.constant 0 : index
    %c0_75 = arith.constant 0 : index
    %244 = vector.load %arg5[%c4_73, %c0_74, %c0_75] : memref<5x8x4xbf16, #tpu.memory_space<vmem>>, vector<1x8x4xbf16>
    %245 = vector.shape_cast %244 : vector<1x8x4xbf16> to vector<8x4xbf16>
    %c0_76 = arith.constant 0 : index
    %c0_77 = arith.constant 0 : index
    %246 = vector.load %arg8[%c0_76, %c0_77] : memref<4x256xbf16, #tpu.memory_space<vmem>>, vector<4x256xbf16>
    %cst_78 = arith.constant dense<0.000000e+00> : vector<8x256xf32>
    %247 = tpu.matmul %245, %246, %cst_78 {dimension_numbers = #tpu.dot_dimension_numbers<[1], [0], [0], [1], [0, 0, 1, 1], [], []>} : vector<8x4xbf16>, vector<4x256xbf16>, vector<8x256xf32> -> vector<8x256xf32>
    %248 = arith.addf %243, %247 : vector<8x256xf32>
    %c0_79 = arith.constant 0 : index
    %c0_80 = arith.constant 0 : index
    %249 = vector.load %arg9[%c0_79, %c0_80] : memref<8x256xf32, #tpu.memory_space<vmem>>, vector<8x256xf32>
    tpu.vector_store %arg9[%c0_79, %c0_80], %248 {strides = array<i32>} : memref<8x256xf32, #tpu.memory_space<vmem>>, vector<8x256xf32>,
    %c0_i32_81 = arith.constant 0 : i32
    %250 = arith.cmpi eq, %arg1, %c0_i32_81 : i32
    %251 = arith.extui %250 : i1 to i32
    %c0_i32_82 = arith.constant 0 : i32
    %252 = arith.cmpi ne, %251, %c0_i32_82 : i32
    scf.if %252 {
      %c0_83 = arith.constant 0 : index
      %c0_84 = arith.constant 0 : index
      %253 = vector.load %arg9[%c0_83, %c0_84] : memref<8x256xf32, #tpu.memory_space<vmem>>, vector<8x256xf32>
      %c0_85 = arith.constant 0 : index
      %c0_86 = arith.constant 0 : index
      %254 = vector.load %arg6[%c0_85, %c0_86] : memref<8x1xf32, #tpu.memory_space<vmem>>, vector<8x1xf32>
      %255 = vector.broadcast %254 : vector<8x1xf32> to vector<8x256xf32>
      %256 = arith.addf %253, %255 : vector<8x256xf32>
      %cst_87 = arith.constant 0.000000e+00 : f32
      %257 = vector.broadcast %cst_87 : f32 to vector<8x256xf32>
      %258 = arith.maximumf %256, %257 : vector<8x256xf32>
      %259 = arith.truncf %258 : vector<8x256xf32> to vector<8x256xbf16>
      %c0_88 = arith.constant 0 : index
      %c0_89 = arith.constant 0 : index
      %260 = vector.load %arg7[%c0_88, %c0_89] : memref<8x256xbf16, #tpu.memory_space<vmem>>, vector<8x256xbf16>
      tpu.vector_store %arg7[%c0_88, %c0_89], %259 {strides = array<i32>} : memref<8x256xbf16, #tpu.memory_space<vmem>>, vector<8x256xbf16>,
    } else {
    }
    return
  }
  func.func @transform_0(%arg0: i32, %arg1: i32) -> (i32, i32, i32) {
    %c0_i32 = arith.constant 0 : i32
    %c0_i32_0 = arith.constant 0 : i32
    return %arg1, %arg0, %c0_i32 : i32, i32, i32
  }
  func.func @transform_1(%arg0: i32, %arg1: i32) -> (i32, i32) {
    %c0_i32 = arith.constant 0 : i32
    %c0_i32_0 = arith.constant 0 : i32
    %c0_i32_1 = arith.constant 0 : i32
    return %c0_i32, %c0_i32_0 : i32, i32
  }
  func.func @transform_2(%arg0: i32, %arg1: i32) -> (i32, i32, i32) {
    %c0_i32 = arith.constant 0 : i32
    %c0_i32_0 = arith.constant 0 : i32
    %c0_i32_1 = arith.constant 0 : i32
    %c0_i32_2 = arith.constant 0 : i32
    return %c0_i32, %c0_i32_0, %c0_i32_1 : i32, i32, i32
  }
  func.func @transform_3(%arg0: i32, %arg1: i32) -> (i32, i32, i32) {
    %c0_i32 = arith.constant 0 : i32
    %c0_i32_0 = arith.constant 0 : i32
    %c0_i32_1 = arith.constant 0 : i32
    return %c0_i32, %c0_i32_0, %arg1 : i32, i32, i32
  }
  func.func @transform_4(%arg0: i32, %arg1: i32) -> (i32, i32) {
    %c0_i32 = arith.constant 0 : i32
    %c0_i32_0 = arith.constant 0 : i32
    %c0_i32_1 = arith.constant 0 : i32
    return %c0_i32, %c0_i32_0 : i32, i32
  }
  func.func @transform_5(%arg0: i32, %arg1: i32) -> (i32, i32) {
    %c0_i32 = arith.constant 0 : i32
    %c0_i32_0 = arith.constant 0 : i32
    return %c0_i32, %arg0 : i32, i32
  }
}

</mosaic_0001>

<llo_original>
// kernel: tpu_custom_call.1
$region0: #{tpu_custom_call.1}
  #allocation0 [shape = 'u32[]', space=smem, size = 0x4, offset = 0x4, fixed_abs, tag = 'smem constant byte address 0x4 - core index']
  #allocation1 [shape = 'u32[144,128]{1,0:T(1,128)}', space=vmem, size = 0x12000, scoped, tag = 'internal scratch']
  #allocation2 [shape = 'bf16[4,256]{1,0:T(4,128)(2,1)}', space=vmem, size = 0x800, scoped, tag = 'scratch operand']
  #allocation3 [shape = 'f32[8,256]{1,0:T(8,128)}', space=vmem, size = 0x2000, scoped, tag = 'scratch operand']
  %s0 = inlined_call_operand.vmem [shape: bf16[4,32,16], index: 0, kind: input, shape index: {}]
  %s1 = inlined_call_operand.vmem [shape: bf16[16,80], index: 1, kind: input, shape index: {}]
  %s2 = inlined_call_operand.vmem [shape: bf16[5,16,16], index: 2, kind: input, shape index: {}]
  %s3 = inlined_call_operand.vmem [shape: bf16[5,8,4], index: 3, kind: input, shape index: {}]
  %s4 = inlined_call_operand.vmem [shape: f32[8,1], index: 4, kind: input, shape index: {}]
  %s5 = inlined_call_operand.hbm [shape: bf16[8,512], index: 5, kind: output, shape index: {}]
  %s6 = sld [smem:[#allocation0]]
  $region102: #{tpu_custom_call.1} parent=0
    _
  %s8 = ssub.s32 1, %s6
  %s9 = scalar_select 0, %s8, %s6
  $region1: #{tpu_custom_call.1} parent=0
    #allocation4 [shape = 'u8[32768]{0}', space=vmem, size = 0x8000, scoped, tag = 'input window, operand 0']
    #allocation5 [shape = 'u8[8192]{0}', space=vmem, size = 0x2000, scoped, tag = 'output window, operand 0']
    #allocation6 [shape = 's32[2]{0}', space=sflag, size = 0x8, scoped, tag = 'scoped memory for tpu_custom_call.1']
    %10 = vsyncpa [#allocation6], 0
    %s11 = scalar_lea.sflag [#allocation6], 1
    %12 = vsyncpa %s11, 0
    loop: start=0, step=1, limit=4
    $region2: #{tpu_custom_call.1} parent=1 // loop_pre_header
      _
    $region3: #{tpu_custom_call.1} parent=1 // loop_header
      %s14 = sphi 0, %s18
      %p15 = scmp.ge.s32.totalorder %s14, 4
      %s21 = sphi 0, %s33
      %s22 = sphi 0, %s29
      %s23 = sphi 0, %s21
      %s24 = sphi 0, %s22
      %s25 = sphi 0, %s23
      %s26 = sphi 0, %s24
      %s38 = sphi 0, %s40
      %s41 = sphi 0, %s38
      %s42 = sphi 0, %s41
      %s58 = sphi 0, %s42
      %s62 = sphi 0, %s62
      %s64 = sphi 0, %s62
      %s65 = sphi 0, %s64
      %s79 = sphi 0, %s65
      %s83 = sphi 0, %s83
      %s85 = sphi 0, %s83
      %s86 = sphi 0, %s85
      %s100 = sphi 0, %s86
      %s106 = sphi 0, %s108
      %s109 = sphi 0, %s106
      %s110 = sphi 0, %s109
      %s126 = sphi 0, %s110
      %s130 = sphi 0, %s130
      %s132 = sphi 0, %s130
      %s133 = sphi 0, %s132
      %s147 = sphi 0, %s133
      %s153 = sphi 0, %s155
      %s156 = sphi 0, %s153
      %s157 = sphi 0, %s156
      %s173 = sphi 0, %s157
    $region4: #{tpu_custom_call.1} parent=1 // loop_header_branch
      %17 = sbr.rel (%p15) target = $region8
    $region5: #{tpu_custom_call.1} parent=1 // loop_body
      %s19 = ssub.s32 %s14, 1
      %s20 = ssub.s32 %s14, 2
      %s27 = sadd.s32 1, %s22
      %p28 = scmp.ge.s32.totalorder %s27, 1
      %s29 = scalar_select %p28, 0, %s27
      %s30 = sadd.s32 1, %s21
      %s31 = scalar_select %p28, %s30, %s21
      %p32 = scmp.ge.s32.totalorder %s31, 2
      %s33 = scalar_select %p32, 0, %s31
      %s34 = ssub.s32 %s22, %s29
      %s35 = ssub.s32 %s21, %s33
      %s36 = sor.u32 %s34, %s35
      %p37 = scmp.eq.s32.totalorder %s36, 0
      %s39 = sadd.s32 %s38, 1
      %s40 = scalar_select %p37, %s38, %s39
      %p43 = pneg %p37
      %p44 = scmp.eq.s32.totalorder %s14, 1
      %p45 = por %p43, %p44
      %p46 = scmp.ne.s32.totalorder %s38, %s41
      %p47 = scmp.eq.s32.totalorder %s14, 0
      %p48 = por %p46, %p47
      %p49 = scmp.ne.s32.totalorder %s38, %s41
      %p50 = scmp.eq.s32.totalorder %s19, 1
      %p51 = por %p49, %p50
      %p52 = scmp.ne.s32.totalorder %s41, %s42
      %p53 = scmp.eq.s32.totalorder %s19, 0
      %p54 = por %p52, %p53
      %p55 = scmp.ne.s32.totalorder %s41, %s42
      %p56 = scmp.eq.s32.totalorder %s20, 1
      %p57 = por %p55, %p56
      %p59 = scmp.ne.s32.totalorder %s42, %s58
      %p60 = scmp.eq.s32.totalorder %s20, 0
      %p61 = por %p59, %p60
      %s63 = sadd.s32 %s62, 1
      %p66 = scmp.eq.s32.totalorder %s14, 1
      %p67 = scmp.ne.s32.totalorder %s62, %s64
      %p68 = scmp.eq.s32.totalorder %s14, 0
      %p69 = por %p67, %p68
      %p70 = scmp.ne.s32.totalorder %s62, %s64
      %p71 = scmp.eq.s32.totalorder %s19, 1
      %p72 = por %p70, %p71
      %p73 = scmp.ne.s32.totalorder %s64, %s65
      %p74 = scmp.eq.s32.totalorder %s19, 0
      %p75 = por %p73, %p74
      %p76 = scmp.ne.s32.totalorder %s64, %s65
      %p77 = scmp.eq.s32.totalorder %s20, 1
      %p78 = por %p76, %p77
      %p80 = scmp.ne.s32.totalorder %s65, %s79
      %p81 = scmp.eq.s32.totalorder %s20, 0
      %p82 = por %p80, %p81
      %s84 = sadd.s32 %s83, 1
      %p87 = scmp.eq.s32.totalorder %s14, 1
      %p88 = scmp.ne.s32.totalorder %s83, %s85
      %p89 = scmp.eq.s32.totalorder %s14, 0
      %p90 = por %p88, %p89
      %p91 = scmp.ne.s32.totalorder %s83, %s85
      %p92 = scmp.eq.s32.totalorder %s19, 1
      %p93 = por %p91, %p92
      %p94 = scmp.ne.s32.totalorder %s85, %s86
      %p95 = scmp.eq.s32.totalorder %s19, 0
      %p96 = por %p94, %p95
      %p97 = scmp.ne.s32.totalorder %s85, %s86
      %p98 = scmp.eq.s32.totalorder %s20, 1
      %p99 = por %p97, %p98
      %p101 = scmp.ne.s32.totalorder %s86, %s100
      %p102 = scmp.eq.s32.totalorder %s20, 0
      %p103 = por %p101, %p102
      %s104 = ssub.s32 %s22, %s29
      %p105 = scmp.eq.s32.totalorder %s104, 0
      %s107 = sadd.s32 %s106, 1
      %s108 = scalar_select %p105, %s106, %s107
      %p111 = pneg %p105
      %p112 = scmp.eq.s32.totalorder %s14, 1
      %p113 = por %p111, %p112
      %p114 = scmp.ne.s32.totalorder %s106, %s109
      %p115 = scmp.eq.s32.totalorder %s14, 0
      %p116 = por %p114, %p115
      %p117 = scmp.ne.s32.totalorder %s106, %s109
      %p118 = scmp.eq.s32.totalorder %s19, 1
      %p119 = por %p117, %p118
      %p120 = scmp.ne.s32.totalorder %s109, %s110
      %p121 = scmp.eq.s32.totalorder %s19, 0
      %p122 = por %p120, %p121
      %p123 = scmp.ne.s32.totalorder %s109, %s110
      %p124 = scmp.eq.s32.totalorder %s20, 1
      %p125 = por %p123, %p124
      %p127 = scmp.ne.s32.totalorder %s110, %s126
      %p128 = scmp.eq.s32.totalorder %s20, 0
      %p129 = por %p127, %p128
      %s131 = sadd.s32 %s130, 1
      %p134 = scmp.eq.s32.totalorder %s14, 1
      %p135 = scmp.ne.s32.totalorder %s130, %s132
      %p136 = scmp.eq.s32.totalorder %s14, 0
      %p137 = por %p135, %p136
      %p138 = scmp.ne.s32.totalorder %s130, %s132
      %p139 = scmp.eq.s32.totalorder %s19, 1
      %p140 = por %p138, %p139
      %p141 = scmp.ne.s32.totalorder %s132, %s133
      %p142 = scmp.eq.s32.totalorder %s19, 0
      %p143 = por %p141, %p142
      %p144 = scmp.ne.s32.totalorder %s132, %s133
      %p145 = scmp.eq.s32.totalorder %s20, 1
      %p146 = por %p144, %p145
      %p148 = scmp.ne.s32.totalorder %s133, %s147
      %p149 = scmp.eq.s32.totalorder %s20, 0
      %p150 = por %p148, %p149
      %s151 = ssub.s32 %s21, %s33
      %p152 = scmp.eq.s32.totalorder %s151, 0
      %s154 = sadd.s32 %s153, 1
      %s155 = scalar_select %p152, %s153, %s154
      %p158 = pneg %p152
      %p159 = scmp.eq.s32.totalorder %s14, 1
      %p160 = por %p158, %p159
      %p161 = scmp.ne.s32.totalorder %s153, %s156
      %p162 = scmp.eq.s32.totalorder %s14, 0
      %p163 = por %p161, %p162
      %p164 = scmp.ne.s32.totalorder %s153, %s156
      %p165 = scmp.eq.s32.totalorder %s19, 1
      %p166 = por %p164, %p165
      %p167 = scmp.ne.s32.totalorder %s156, %s157
      %p168 = scmp.eq.s32.totalorder %s19, 0
      %p169 = por %p167, %p168
      %p170 = scmp.ne.s32.totalorder %s156, %s157
      %p171 = scmp.eq.s32.totalorder %s20, 1
      %p172 = por %p170, %p171
      %p174 = scmp.ne.s32.totalorder %s157, %s173
      %p175 = scmp.eq.s32.totalorder %s20, 0
      %p176 = por %p174, %p175
      %p177 = scmp.le.s32.totalorder 1, %s14
      %p178 = scmp.lt.s32.totalorder %s14, 3
      %p179 = pnand %p177, %p178
      %p180 = pneg %p179
      // Predicated region
      $region9: #{tpu_custom_call.1} parent=5 // pred_check
        _
      $region10: #{tpu_custom_call.1} parent=5 // pred_check_branch
        %182 = sbr.rel (%p179) target = $region12
      $region11: #{tpu_custom_call.1} parent=5 // pred_region
        %s183 = ssub.s32 %s14, 1
        // Predicated region
        $region13: #{tpu_custom_call.1} parent=11 // pred_check
          %p184 = pneg %p75
        $region14: #{tpu_custom_call.1} parent=11 // pred_check_branch
          %186 = sbr.rel (%p184) target = $region16
        $region15: #{tpu_custom_call.1} parent=11 // pred_region
          _
        $region16: #{tpu_custom_call.1} parent=11 // pred_fallthru
          _
        // Predicated region
        $region17: #{tpu_custom_call.1} parent=11 // pred_check
          %p187 = pneg %p96
        $region18: #{tpu_custom_call.1} parent=11 // pred_check_branch
          %189 = sbr.rel (%p187) target = $region20
        $region19: #{tpu_custom_call.1} parent=11 // pred_region
          _
        $region20: #{tpu_custom_call.1} parent=11 // pred_fallthru
          _
        // Predicated region
        $region21: #{tpu_custom_call.1} parent=11 // pred_check
          %p190 = pneg %p122
        $region22: #{tpu_custom_call.1} parent=11 // pred_check_branch
          %192 = sbr.rel (%p190) target = $region24
        $region23: #{tpu_custom_call.1} parent=11 // pred_region
          %p193 = scmp.lt.s32.totalorder %s24, 0
          %s194 = scalar_select %p193, %s24, 0
          %s195 = smul.addr %s194, 4
          %s196 = scalar_lea.vmem %s3, %s195
        $region24: #{tpu_custom_call.1} parent=11 // pred_fallthru
          _
        // Predicated region
        $region25: #{tpu_custom_call.1} parent=11 // pred_check
          %p197 = pneg %p143
        $region26: #{tpu_custom_call.1} parent=11 // pred_check_branch
          %199 = sbr.rel (%p197) target = $region28
        $region27: #{tpu_custom_call.1} parent=11 // pred_region
          _
        $region28: #{tpu_custom_call.1} parent=11 // pred_fallthru
          _
      $region12: #{tpu_custom_call.1} parent=5 // pred_fallthru
        _
      %p200 = scmp.lt.s32.totalorder %s14, 2
      // Predicated region
      $region29: #{tpu_custom_call.1} parent=5 // pred_check
        %p201 = pneg %p200
      $region30: #{tpu_custom_call.1} parent=5 // pred_check_branch
        %203 = sbr.rel (%p201) target = $region32
      $region31: #{tpu_custom_call.1} parent=5 // pred_region
        // Predicated region
        $region33: #{tpu_custom_call.1} parent=31 // pred_check
          %p204 = pneg %p48
        $region34: #{tpu_custom_call.1} parent=31 // pred_check_branch
          %206 = sbr.rel (%p204) target = $region36
        $region35: #{tpu_custom_call.1} parent=31 // pred_region
          %s207 = sand.u32 %s38, 1
          %s208 = sand.u32 %s38, 1
          %s209 = smul.addr %s208, 32
          %s210 = scalar_lea.vmem [#allocation4], %s209
          %s211 = smul.u32 4, %s22
          %s212 = smul.u32 2, %s21
          %s213 = smul.addr %s211, 4
          %s214 = sadd.s32 %s212, %s213
          %s215 = smul.addr %s214, 4
          %s216 = scalar_lea.vmem %s0, %s215
          // Predicated region
          $region37: #{tpu_custom_call.1} parent=35 // pred_check
            _
          $region38: #{tpu_custom_call.1} parent=35 // pred_check_branch
            %218 = sbr.rel (0) target = $region40
          $region39: #{tpu_custom_call.1} parent=35 // pred_region
            // Predicated region
            $region41: #{tpu_custom_call.1} parent=39 // pred_check
              _
            $region42: #{tpu_custom_call.1} parent=39 // pred_check_branch
              %220 = sbr.rel target = $region44
            $region43: #{tpu_custom_call.1} parent=39 // pred_region
              // Predicated region
              $region56: #{tpu_custom_call.1} parent=43 // pred_check
                _
              $region57: #{tpu_custom_call.1} parent=43 // pred_check_branch
                %249 = sbr.rel (0) target = $region59
              $region58: #{tpu_custom_call.1} parent=43 // pred_region
                loop: start=0, step=1, limit=1
                $region60: #{tpu_custom_call.1} parent=58 // loop_pre_header
                  _
                $region61: #{tpu_custom_call.1} parent=58 // loop_header
                  %s251 = sphi 0, %s255
                  %p252 = scmp.ge.s32.totalorder %s251, 1
                  %s256 = sphi %s216, %s216
                  %s257 = sphi %s210, %s210
                $region62: #{tpu_custom_call.1} parent=58 // loop_header_branch
                  %254 = sbr.rel (%p252) target = $region66
                $region63: #{tpu_custom_call.1} parent=58 // loop_body
                  _
                $region64: #{tpu_custom_call.1} parent=58 // loop_footer
                  %s255 = sadd.s32 1, %s251
                $region65: #{tpu_custom_call.1} parent=58 // loop_footer_branch
                  %250 = sbr.rel target = $region61
                $region66: #{tpu_custom_call.1} parent=58 // loop_exit
                  _
                loop: start=0, step=1, limit=1
                $region67: #{tpu_custom_call.1} parent=58 // loop_pre_header
                  _
                $region68: #{tpu_custom_call.1} parent=58 // loop_header
                  %s260 = sphi 0, %s264
                  %p261 = scmp.ge.s32.totalorder %s260, 1
                  %s265 = sphi %s216, %s216
                  %s266 = sphi %s210, %s210
                $region69: #{tpu_custom_call.1} parent=58 // loop_header_branch
                  %263 = sbr.rel (%p261) target = $region73
                $region70: #{tpu_custom_call.1} parent=58 // loop_body
                  %v267 = vld [vmem:[%s265] sm:$0xf]
                  %268 = vst [vmem:[%s266] sm:$0xf] %v267
                  %v269 = vld [vmem:[%s265 + $0x4] sm:$0xf]
                  %270 = vst [vmem:[%s266 + $0x4] sm:$0xf] %v269
                  %v271 = vld [vmem:[%s265 + $0x10] sm:$0xf]
                  %272 = vst [vmem:[%s266 + $0x8] sm:$0xf] %v271
                  %v273 = vld [vmem:[%s265 + $0x14] sm:$0xf]
                  %274 = vst [vmem:[%s266 + $0xc] sm:$0xf] %v273
                  %v275 = vld [vmem:[%s265 + $0x20] sm:$0xf]
                  %276 = vst [vmem:[%s266 + $0x10] sm:$0xf] %v275
                  %v277 = vld [vmem:[%s265 + $0x24] sm:$0xf]
                  %278 = vst [vmem:[%s266 + $0x14] sm:$0xf] %v277
                  %v279 = vld [vmem:[%s265 + $0x30] sm:$0xf]
                  %280 = vst [vmem:[%s266 + $0x18] sm:$0xf] %v279
                  %v281 = vld [vmem:[%s265 + $0x34] sm:$0xf]
                  %282 = vst [vmem:[%s266 + $0x1c] sm:$0xf] %v281
                $region71: #{tpu_custom_call.1} parent=58 // loop_footer
                  %s264 = sadd.s32 1, %s260
                $region72: #{tpu_custom_call.1} parent=58 // loop_footer_branch
                  %259 = sbr.rel target = $region68
                $region73: #{tpu_custom_call.1} parent=58 // loop_exit
                  _
              $region59: #{tpu_custom_call.1} parent=43 // pred_fallthru
                _
            $region44: #{tpu_custom_call.1} parent=39 // pred_fallthru
              _
            // Predicated region
            $region45: #{tpu_custom_call.1} parent=39 // pred_check
              _
            $region46: #{tpu_custom_call.1} parent=39 // pred_check_branch
              %222 = sbr.rel (0) target = $region48
            $region47: #{tpu_custom_call.1} parent=39 // pred_region
              loop: start=0, step=1, limit=1
              $region49: #{tpu_custom_call.1} parent=47 // loop_pre_header
                _
              $region50: #{tpu_custom_call.1} parent=47 // loop_header
                %s225 = sphi 0, %s229
                %p226 = scmp.ge.s32.totalorder %s225, 1
                %s230 = sphi %s216, %s216
                %s231 = sphi %s210, %s210
              $region51: #{tpu_custom_call.1} parent=47 // loop_header_branch
                %228 = sbr.rel (%p226) target = $region55
              $region52: #{tpu_custom_call.1} parent=47 // loop_body
                %v232 = vld [vmem:[%s230] sm:$0xf]
                %233 = vst [vmem:[%s231] sm:$0xf] %v232
                %v234 = vld [vmem:[%s230 + $0x4] sm:$0xf]
                %235 = vst [vmem:[%s231 + $0x4] sm:$0xf] %v234
                %v236 = vld [vmem:[%s230 + $0x10] sm:$0xf]
                %237 = vst [vmem:[%s231 + $0x8] sm:$0xf] %v236
                %v238 = vld [vmem:[%s230 + $0x14] sm:$0xf]
                %239 = vst [vmem:[%s231 + $0xc] sm:$0xf] %v238
                %v240 = vld [vmem:[%s230 + $0x20] sm:$0xf]
                %241 = vst [vmem:[%s231 + $0x10] sm:$0xf] %v240
                %v242 = vld [vmem:[%s230 + $0x24] sm:$0xf]
                %243 = vst [vmem:[%s231 + $0x14] sm:$0xf] %v242
                %v244 = vld [vmem:[%s230 + $0x30] sm:$0xf]
                %245 = vst [vmem:[%s231 + $0x18] sm:$0xf] %v244
                %v246 = vld [vmem:[%s230 + $0x34] sm:$0xf]
                %247 = vst [vmem:[%s231 + $0x1c] sm:$0xf] %v246
              $region53: #{tpu_custom_call.1} parent=47 // loop_footer
                %s229 = sadd.s32 1, %s225
              $region54: #{tpu_custom_call.1} parent=47 // loop_footer_branch
                %224 = sbr.rel target = $region50
              $region55: #{tpu_custom_call.1} parent=47 // loop_exit
                _
            $region48: #{tpu_custom_call.1} parent=39 // pred_fallthru
              _
          $region40: #{tpu_custom_call.1} parent=35 // pred_fallthru
            _
          %283 = vnop
        $region36: #{tpu_custom_call.1} parent=31 // pred_fallthru
          _
      $region32: #{tpu_custom_call.1} parent=5 // pred_fallthru
        _
      %p284 = scmp.le.s32.totalorder 1, %s14
      %p285 = scmp.lt.s32.totalorder %s14, 3
      %p286 = pnand %p284, %p285
      %p287 = pneg %p286
      // Predicated region
      $region74: #{tpu_custom_call.1} parent=5 // pred_check
        _
      $region75: #{tpu_custom_call.1} parent=5 // pred_check_branch
        %289 = sbr.rel (%p286) target = $region77
      $region76: #{tpu_custom_call.1} parent=5 // pred_region
        %s290 = ssub.s32 %s14, 1
        %s291 = sand.u32 %s41, 1
        %s292 = sand.u32 %s41, 1
        %s293 = smul.addr %s292, 32
        %s294 = scalar_lea.vmem [#allocation4], %s293
        // Predicated region
        $region78: #{tpu_custom_call.1} parent=76 // pred_check
          %p295 = pneg %p54
        $region79: #{tpu_custom_call.1} parent=76 // pred_check_branch
          %297 = sbr.rel (%p295) target = $region81
        $region80: #{tpu_custom_call.1} parent=76 // pred_region
          _
        $region81: #{tpu_custom_call.1} parent=76 // pred_fallthru
          _
        %s298 = sand.u32 %s41, 1
        %s299 = sand.u32 %s41, 1
        %s300 = smul.addr %s299, 32
        %s301 = scalar_lea.vmem [#allocation4], %s300
        %p302 = pneg %p54
        %p303 = pneg %p51
        %p304 = pneg %p75
        %p305 = pneg %p72
        %p306 = pneg %p96
        %p307 = pneg %p93
        %p308 = scmp.lt.s32.totalorder %s24, 0
        %s309 = scalar_select %p308, %s24, 0
        %s310 = smul.addr %s309, 4
        %s311 = scalar_lea.vmem %s3, %s310
        %p312 = pneg %p122
        %p313 = pneg %p119
        %p314 = pneg %p143
        %p315 = pneg %p140
        %p316 = pneg %p169
        %p317 = pneg %p166
        %s318 = sand.u32 %s156, 1
        %s319 = scalar_lea.sflag [#allocation6], %s318
        %s320 = sand.u32 %s156, 1
        %s321 = smul.addr %s320, 8
        %s322 = scalar_lea.vmem [#allocation5], %s321
        %s323 = smul.u32 4, %s24
        %s324 = smul.u32 2, %s23
        %p325 = scmp.lt.s32.totalorder %s24, 0
        %s326 = scalar_select %p325, %s24, 0
        %s327 = smul.addr %s326, 4
        %s328 = scalar_lea.vmem %s3, %s327
        %s329 = smul.u32 2, %s23
        %p331 = scmp.eq.s32.totalorder %s24, 0
        // Predicated region
        $region82: #{tpu_custom_call.1} parent=76 // pred_check
          %p332 = pneg %p331
        $region83: #{tpu_custom_call.1} parent=76 // pred_check_branch
          %334 = sbr.rel (%p332) target = $region85
        $region84: #{tpu_custom_call.1} parent=76 // pred_region
          %335 = vst [vmem:[#allocation3] sm:$0xff] 0.0
          %336 = vst [vmem:[#allocation3 + $0x8] sm:$0xff] 0.0
        $region85: #{tpu_custom_call.1} parent=76 // pred_fallthru
          _
        %v337 = vld [vmem:[%s294] sm:$0xf]
        %v338 = vld [vmem:[%s294 + $0x4] sm:$0xf]
        %v339 = vld [vmem:[%s294 + $0x8] sm:$0xf]
        %v340 = vld [vmem:[%s294 + $0xc] sm:$0xf]
        %v341 = vld [vmem:[%s294 + $0x10] sm:$0xf]
        %v342 = vld [vmem:[%s294 + $0x14] sm:$0xf]
        %v343 = vld [vmem:[%s294 + $0x18] sm:$0xf]
        %v344 = vld [vmem:[%s294 + $0x1c] sm:$0xf]
        %v345 = vld [vmem:[%s1] sm:$0xf]
        %v346 = vld [vmem:[%s1 + $0x4] sm:$0xf]
        %v355 = vunpack.c.l.b16 %v337
        %v356 = vunpack.c.l.b16 %v338
        %v357 = vunpack.c.l.b16 %v339
        %v358 = vunpack.c.l.b16 %v340
        %v359 = vunpack.c.l.b16 %v341
        %v360 = vunpack.c.l.b16 %v342
        %v361 = vunpack.c.l.b16 %v343
        %v362 = vunpack.c.l.b16 %v344
        %v363 = vpack.c.b16 %v356, %v355
        %v364 = vpack.c.b16 %v358, %v357
        %v365 = vpack.c.b16 %v360, %v359
        %v366 = vpack.c.b16 %v362, %v361
        %v369 = vunpack.c.l.b16 %v345
        %v370 = vunpack.c.l.b16 %v346
        %v371 = vpack.c.b16 %v370, %v369
        %vm373 = vcmask 130048
        %v375 = vsel %vm373, %v363, 0
        %v378 = vsel %vm373, %v364, 0
        %v381 = vsel %vm373, %v365, 0
        %v384 = vsel %vm373, %v366, 0
        %386 = vmatprep.subr.bf16.mxu0 0
        %387 = vmatpush1.bf16.msra.mxu0 %v371
        %388 = vmatprep.subr.bf16.mxu0 0
        %389 = vmatpush1.bf16.msra.mxu0 0
        %390 = vmatprep.subr.bf16.mxu0 0
        %391 = vmatpush1.bf16.msra.mxu0 0
        %392 = vmatprep.subr.bf16.mxu0 0
        %393 = vmatpush1.bf16.msra.mxu0 0
        %394 = vmatprep.subr.bf16.mxu0 0
        %395 = vmatpush1.bf16.msra.mxu0 0
        %396 = vmatprep.subr.bf16.mxu0 0
        %397 = vmatpush1.bf16.msra.mxu0 0
        %398 = vmatprep.subr.bf16.mxu0 0
        %399 = vmatpush1.bf16.msra.mxu0 0
        %400 = vmatprep.subr.bf16.mxu0 0
        %401 = vmatpush1.bf16.msra.mxu0 0
        %402 = vmatprep.subr.bf16.mxu0 0
        %403 = vmatpush1.bf16.msra.mxu0 0
        %404 = vmatprep.subr.bf16.mxu0 0
        %405 = vmatpush1.bf16.msra.mxu0 0
        %406 = vmatprep.subr.bf16.mxu0 0
        %407 = vmatpush1.bf16.msra.mxu0 0
        %408 = vmatprep.subr.bf16.mxu0 0
        %409 = vmatpush1.bf16.msra.mxu0 0
        %410 = vmatprep.subr.bf16.mxu0 0
        %411 = vmatpush1.bf16.msra.mxu0 0
        %412 = vmatprep.subr.bf16.mxu0 0
        %413 = vmatpush1.bf16.msra.mxu0 0
        %414 = vmatprep.subr.bf16.mxu0 0
        %415 = vmatpush1.bf16.msra.mxu0 0
        %416 = vmatprep.subr.bf16.mxu0 0
        %417 = vmatpush1.bf16.msra.mxu0 0
        %418 = vmatprep.mubr.bf16.mxu0 0
        %419 = vmatmul.mubr.bf16.gmra.mrb[0].mxu0 %v375
        %v420 = vpop.f32.mrb[0].mxu0
        %v421 = vadd.f32 0.0, %v420
        %v422 = vpop.f32.mrb[0].mxu0
        %v423 = vpop.f32.mrb[0].mxu0
        %v424 = vadd.f32 0.0, %v423
        %v425 = vpop.f32.mrb[0].mxu0
        %426 = vmatprep.mubr.bf16.mxu0 0
        %427 = vmatmul.mubr.bf16.gmra.mrb[0].mxu0 %v378
        %v428 = vpop.f32.mrb[0].mxu0
        %v429 = vadd.f32 0.0, %v428
        %v430 = vpop.f32.mrb[0].mxu0
        %v431 = vpop.f32.mrb[0].mxu0
        %v432 = vadd.f32 0.0, %v431
        %v433 = vpop.f32.mrb[0].mxu0
        %434 = vmatprep.mubr.bf16.mxu0 0
        %435 = vmatmul.mubr.bf16.gmra.mrb[0].mxu0 %v381
        %v436 = vpop.f32.mrb[0].mxu0
        %v437 = vadd.f32 0.0, %v436
        %v438 = vpop.f32.mrb[0].mxu0
        %v439 = vpop.f32.mrb[0].mxu0
        %v440 = vadd.f32 0.0, %v439
        %v441 = vpop.f32.mrb[0].mxu0
        %442 = vmatprep.mubr.bf16.mxu0 0
        %443 = vmatmul.mubr.bf16.gmra.mrb[0].mxu0 %v384
        %v444 = vpop.f32.mrb[0].mxu0
        %v445 = vadd.f32 0.0, %v444
        %v446 = vpop.f32.mrb[0].mxu0
        %v447 = vpop.f32.mrb[0].mxu0
        %v448 = vadd.f32 0.0, %v447
        %v449 = vpop.f32.mrb[0].mxu0
        %450 = vdwg.mxu0
        %v451 = vpack.c.bf16 %v424, %v421
        %v452 = vpack.c.bf16 %v432, %v429
        %v453 = vpack.c.bf16 %v440, %v437
        %v454 = vpack.c.bf16 %v448, %v445
        %455 = vxpose.xlu0.c.b16.start [1/8] %v451, 128
        %456 = vxpose.xlu0.c.b16.cont [2/8] 0, 128
        %457 = vxpose.xlu0.c.b16.cont [3/8] 0, 128
        %458 = vxpose.xlu0.c.b16.cont [4/8] 0, 128
        %459 = vxpose.xlu0.c.b16.cont [5/8] 0, 128
        %460 = vxpose.xlu0.c.b16.cont [6/8] 0, 128
        %461 = vxpose.xlu0.c.b16.cont [7/8] 0, 128
        %462 = vxpose.xlu0.c.b16.end [8/8] 0, 128
        %v463 = vpop.trf.xlu0
        %v464 = vpop.trf.xlu0
        %v465 = vpop.trf.xlu0
        %v466 = vpop.trf.xlu0
        %v467 = vpop.trf.xlu0
        %v468 = vpop.trf.xlu0
        %v469 = vpop.trf.xlu0
        %v470 = vpop.trf.xlu0
        %471 = vxpose.xlu0.c.b16.start [1/8] %v452, 128
        %472 = vxpose.xlu0.c.b16.cont [2/8] 0, 128
        %473 = vxpose.xlu0.c.b16.cont [3/8] 0, 128
        %474 = vxpose.xlu0.c.b16.cont [4/8] 0, 128
        %475 = vxpose.xlu0.c.b16.cont [5/8] 0, 128
        %476 = vxpose.xlu0.c.b16.cont [6/8] 0, 128
        %477 = vxpose.xlu0.c.b16.cont [7/8] 0, 128
        %478 = vxpose.xlu0.c.b16.end [8/8] 0, 128
        %v479 = vpop.trf.xlu0
        %v480 = vpop.trf.xlu0
        %v481 = vpop.trf.xlu0
        %v482 = vpop.trf.xlu0
        %v483 = vpop.trf.xlu0
        %v484 = vpop.trf.xlu0
        %v485 = vpop.trf.xlu0
        %v486 = vpop.trf.xlu0
        %487 = vxpose.xlu0.c.b16.start [1/8] %v453, 128
        %488 = vxpose.xlu0.c.b16.cont [2/8] 0, 128
        %489 = vxpose.xlu0.c.b16.cont [3/8] 0, 128
        %490 = vxpose.xlu0.c.b16.cont [4/8] 0, 128
        %491 = vxpose.xlu0.c.b16.cont [5/8] 0, 128
        %492 = vxpose.xlu0.c.b16.cont [6/8] 0, 128
        %493 = vxpose.xlu0.c.b16.cont [7/8] 0, 128
        %494 = vxpose.xlu0.c.b16.end [8/8] 0, 128
        %v495 = vpop.trf.xlu0
        %v496 = vpop.trf.xlu0
        %v497 = vpop.trf.xlu0
        %v498 = vpop.trf.xlu0
        %v499 = vpop.trf.xlu0
        %v500 = vpop.trf.xlu0
        %v501 = vpop.trf.xlu0
        %v502 = vpop.trf.xlu0
        %503 = vxpose.xlu0.c.b16.start [1/8] %v454, 128
        %504 = vxpose.xlu0.c.b16.cont [2/8] 0, 128
        %505 = vxpose.xlu0.c.b16.cont [3/8] 0, 128
        %506 = vxpose.xlu0.c.b16.cont [4/8] 0, 128
        %507 = vxpose.xlu0.c.b16.cont [5/8] 0, 128
        %508 = vxpose.xlu0.c.b16.cont [6/8] 0, 128
        %509 = vxpose.xlu0.c.b16.cont [7/8] 0, 128
        %510 = vxpose.xlu0.c.b16.end [8/8] 0, 128
        %v511 = vpop.trf.xlu0
        %v512 = vpop.trf.xlu0
        %v513 = vpop.trf.xlu0
        %v514 = vpop.trf.xlu0
        %v515 = vpop.trf.xlu0
        %v516 = vpop.trf.xlu0
        %v517 = vpop.trf.xlu0
        %v518 = vpop.trf.xlu0
        %v519 = vld [vmem:[%s2] sm:$0xf]
        %v520 = vld [vmem:[%s2 + $0x4] sm:$0xf]
        %v523 = vunpack.c.l.b16 %v519
        %v524 = vunpack.c.l.b16 %v520
        %v525 = vpack.c.b16 %v524, %v523
        %v528 = vsel %vm373, %v463, 0
        %v531 = vsel %vm373, %v479, 0
        %v534 = vsel %vm373, %v495, 0
        %v537 = vsel %vm373, %v511, 0
        %539 = vmatprep.subr.bf16.mxu0 0
        %540 = vmatpush1.bf16.msra.mxu0 %v525
        %541 = vmatprep.subr.bf16.mxu0 0
        %542 = vmatpush1.bf16.msra.mxu0 0
        %543 = vmatprep.subr.bf16.mxu0 0
        %544 = vmatpush1.bf16.msra.mxu0 0
        %545 = vmatprep.subr.bf16.mxu0 0
        %546 = vmatpush1.bf16.msra.mxu0 0
        %547 = vmatprep.subr.bf16.mxu0 0
        %548 = vmatpush1.bf16.msra.mxu0 0
        %549 = vmatprep.subr.bf16.mxu0 0
        %550 = vmatpush1.bf16.msra.mxu0 0
        %551 = vmatprep.subr.bf16.mxu0 0
        %552 = vmatpush1.bf16.msra.mxu0 0
        %553 = vmatprep.subr.bf16.mxu0 0
        %554 = vmatpush1.bf16.msra.mxu0 0
        %555 = vmatprep.subr.bf16.mxu0 0
        %556 = vmatpush1.bf16.msra.mxu0 0
        %557 = vmatprep.subr.bf16.mxu0 0
        %558 = vmatpush1.bf16.msra.mxu0 0
        %559 = vmatprep.subr.bf16.mxu0 0
        %560 = vmatpush1.bf16.msra.mxu0 0
        %561 = vmatprep.subr.bf16.mxu0 0
        %562 = vmatpush1.bf16.msra.mxu0 0
        %563 = vmatprep.subr.bf16.mxu0 0
        %564 = vmatpush1.bf16.msra.mxu0 0
        %565 = vmatprep.subr.bf16.mxu0 0
        %566 = vmatpush1.bf16.msra.mxu0 0
        %567 = vmatprep.subr.bf16.mxu0 0
        %568 = vmatpush1.bf16.msra.mxu0 0
        %569 = vmatprep.subr.bf16.mxu0 0
        %570 = vmatpush1.bf16.msra.mxu0 0
        %571 = vmatprep.mubr.bf16.mxu0 0
        %572 = vmatmul.mubr.bf16.gmra.mrb[0].mxu0 %v528
        %v573 = vpop.f32.mrb[0].mxu0
        %v574 = vadd.f32 0.0, %v573
        %v575 = vpop.f32.mrb[0].mxu0
        %v576 = vpop.f32.mrb[0].mxu0
        %v577 = vadd.f32 0.0, %v576
        %v578 = vpop.f32.mrb[0].mxu0
        %579 = vmatprep.mubr.bf16.mxu0 0
        %580 = vmatmul.mubr.bf16.gmra.mrb[0].mxu0 %v531
        %v581 = vpop.f32.mrb[0].mxu0
        %v582 = vadd.f32 0.0, %v581
        %v583 = vpop.f32.mrb[0].mxu0
        %v584 = vpop.f32.mrb[0].mxu0
        %v585 = vadd.f32 0.0, %v584
        %v586 = vpop.f32.mrb[0].mxu0
        %587 = vmatprep.mubr.bf16.mxu0 0
        %588 = vmatmul.mubr.bf16.gmra.mrb[0].mxu0 %v534
        %v589 = vpop.f32.mrb[0].mxu0
        %v590 = vadd.f32 0.0, %v589
        %v591 = vpop.f32.mrb[0].mxu0
        %v592 = vpop.f32.mrb[0].mxu0
        %v593 = vadd.f32 0.0, %v592
        %v594 = vpop.f32.mrb[0].mxu0
        %595 = vmatprep.mubr.bf16.mxu0 0
        %596 = vmatmul.mubr.bf16.gmra.mrb[0].mxu0 %v537
        %v597 = vpop.f32.mrb[0].mxu0
        %v598 = vadd.f32 0.0, %v597
        %v599 = vpop.f32.mrb[0].mxu0
        %v600 = vpop.f32.mrb[0].mxu0
        %v601 = vadd.f32 0.0, %v600
        %v602 = vpop.f32.mrb[0].mxu0
        %603 = vdwg.mxu0
        %v608 = vrot.slane %v582, 7
        %vm609 = vcmask 1041409
        %v610 = vsel %vm609, %v608, %v574
        %v611 = vrot.slane %v590, 6
        %vm612 = vcmask 1042434
        %v613 = vsel %vm612, %v611, %v610
        %v614 = vrot.slane %v598, 5
        %vm615 = vcmask 1043459
        %v616 = vsel %vm615, %v614, %v613
        %v618 = vrot.slane %v574, 1
        %v619 = vsel %vm609, %v582, %v618
        %v620 = vrot.slane %v590, 7
        %v621 = vsel %vm612, %v620, %v619
        %v622 = vrot.slane %v598, 6
        %v623 = vsel %vm615, %v622, %v621
        %624 = vrot.lane.b32.xlu0 %v623, 16
        %v625 = vpop.permute.xlu0 %624
        %v627 = vrot.slane %v574, 2
        %v628 = vrot.slane %v582, 1
        %v629 = vsel %vm609, %v628, %v627
        %v630 = vsel %vm612, %v590, %v629
        %v631 = vrot.slane %v598, 7
        %v632 = vsel %vm615, %v631, %v630
        %633 = vrot.lane.b32.xlu0 %v632, 32
        %v634 = vpop.permute.xlu0 %633
        %v636 = vrot.slane %v574, 3
        %v637 = vrot.slane %v582, 2
        %v638 = vsel %vm609, %v637, %v636
        %v639 = vrot.slane %v590, 1
        %v640 = vsel %vm612, %v639, %v638
        %v641 = vsel %vm615, %v598, %v640
        %642 = vrot.lane.b32.xlu0 %v641, 48
        %v643 = vpop.permute.xlu0 %642
        %v645 = vrot.slane %v574, 4
        %v646 = vrot.slane %v582, 3
        %v647 = vsel %vm609, %v646, %v645
        %v648 = vrot.slane %v590, 2
        %v649 = vsel %vm612, %v648, %v647
        %v650 = vrot.slane %v598, 1
        %v651 = vsel %vm615, %v650, %v649
        %652 = vrot.lane.b32.xlu0 %v651, 64
        %v653 = vpop.permute.xlu0 %652
        %v655 = vrot.slane %v574, 5
        %v656 = vrot.slane %v582, 4
        %v657 = vsel %vm609, %v656, %v655
        %v658 = vrot.slane %v590, 3
        %v659 = vsel %vm612, %v658, %v657
        %v660 = vrot.slane %v598, 2
        %v661 = vsel %vm615, %v660, %v659
        %662 = vrot.lane.b32.xlu0 %v661, 80
        %v663 = vpop.permute.xlu0 %662
        %v665 = vrot.slane %v574, 6
        %v666 = vrot.slane %v582, 5
        %v667 = vsel %vm609, %v666, %v665
        %v668 = vrot.slane %v590, 4
        %v669 = vsel %vm612, %v668, %v667
        %v670 = vrot.slane %v598, 3
        %v671 = vsel %vm615, %v670, %v669
        %672 = vrot.lane.b32.xlu0 %v671, 96
        %v673 = vpop.permute.xlu0 %672
        %v675 = vrot.slane %v574, 7
        %v676 = vrot.slane %v582, 6
        %v677 = vsel %vm609, %v676, %v675
        %v678 = vrot.slane %v590, 5
        %v679 = vsel %vm612, %v678, %v677
        %v680 = vrot.slane %v598, 4
        %v681 = vsel %vm615, %v680, %v679
        %682 = vrot.lane.b32.xlu0 %v681, 112
        %v683 = vpop.permute.xlu0 %682
        %v689 = vrot.slane %v585, 7
        %v690 = vsel %vm609, %v689, %v577
        %v691 = vrot.slane %v593, 6
        %v692 = vsel %vm612, %v691, %v690
        %v693 = vrot.slane %v601, 5
        %v694 = vsel %vm615, %v693, %v692
        %v696 = vrot.slane %v577, 1
        %v697 = vsel %vm609, %v585, %v696
        %v698 = vrot.slane %v593, 7
        %v699 = vsel %vm612, %v698, %v697
        %v700 = vrot.slane %v601, 6
        %v701 = vsel %vm615, %v700, %v699
        %702 = vrot.lane.b32.xlu0 %v701, 16
        %v703 = vpop.permute.xlu0 %702
        %v705 = vrot.slane %v577, 2
        %v706 = vrot.slane %v585, 1
        %v707 = vsel %vm609, %v706, %v705
        %v708 = vsel %vm612, %v593, %v707
        %v709 = vrot.slane %v601, 7
        %v710 = vsel %vm615, %v709, %v708
        %711 = vrot.lane.b32.xlu0 %v710, 32
        %v712 = vpop.permute.xlu0 %711
        %v714 = vrot.slane %v577, 3
        %v715 = vrot.slane %v585, 2
        %v716 = vsel %vm609, %v715, %v714
        %v717 = vrot.slane %v593, 1
        %v718 = vsel %vm612, %v717, %v716
        %v719 = vsel %vm615, %v601, %v718
        %720 = vrot.lane.b32.xlu0 %v719, 48
        %v721 = vpop.permute.xlu0 %720
        %v723 = vrot.slane %v577, 4
        %v724 = vrot.slane %v585, 3
        %v725 = vsel %vm609, %v724, %v723
        %v726 = vrot.slane %v593, 2
        %v727 = vsel %vm612, %v726, %v725
        %v728 = vrot.slane %v601, 1
        %v729 = vsel %vm615, %v728, %v727
        %730 = vrot.lane.b32.xlu0 %v729, 64
        %v731 = vpop.permute.xlu0 %730
        %v733 = vrot.slane %v577, 5
        %v734 = vrot.slane %v585, 4
        %v735 = vsel %vm609, %v734, %v733
        %v736 = vrot.slane %v593, 3
        %v737 = vsel %vm612, %v736, %v735
        %v738 = vrot.slane %v601, 2
        %v739 = vsel %vm615, %v738, %v737
        %740 = vrot.lane.b32.xlu0 %v739, 80
        %v741 = vpop.permute.xlu0 %740
        %v743 = vrot.slane %v577, 6
        %v744 = vrot.slane %v585, 5
        %v745 = vsel %vm609, %v744, %v743
        %v746 = vrot.slane %v593, 4
        %v747 = vsel %vm612, %v746, %v745
        %v748 = vrot.slane %v601, 3
        %v749 = vsel %vm615, %v748, %v747
        %750 = vrot.lane.b32.xlu0 %v749, 96
        %v751 = vpop.permute.xlu0 %750
        %v753 = vrot.slane %v577, 7
        %v754 = vrot.slane %v585, 6
        %v755 = vsel %vm609, %v754, %v753
        %v756 = vrot.slane %v593, 5
        %v757 = vsel %vm612, %v756, %v755
        %v758 = vrot.slane %v601, 4
        %v759 = vsel %vm615, %v758, %v757
        %760 = vrot.lane.b32.xlu0 %v759, 112
        %v761 = vpop.permute.xlu0 %760
        %v763 = vsel %vm373, %v616, %v625
        %vm764 = vcmask 261120
        %v765 = vsel %vm764, %v763, %v634
        %vm766 = vcmask 392192
        %v767 = vsel %vm766, %v765, %v643
        %vm768 = vcmask 523264
        %v769 = vsel %vm768, %v767, %v653
        %vm770 = vcmask 654336
        %v771 = vsel %vm770, %v769, %v663
        %vm772 = vcmask 785408
        %v773 = vsel %vm772, %v771, %v673
        %vm774 = vcmask 916480
        %v775 = vsel %vm774, %v773, %v683
        %v776 = vsel %vm373, %v694, %v703
        %v777 = vsel %vm764, %v776, %v712
        %v778 = vsel %vm766, %v777, %v721
        %v779 = vsel %vm768, %v778, %v731
        %v780 = vsel %vm770, %v779, %v741
        %v781 = vsel %vm772, %v780, %v751
        %v782 = vsel %vm774, %v781, %v761
        %v783 = vpack.c.bf16 %v775, %v775
        %v784 = vpack.c.bf16 %v782, %v782
        %v787 = vcombine.low %v783, %v784
        %v789 = vunpack.c.l.s4 1983009808
        %v790 = vunpack.c.0.s8 %v789
        %v791 = vlaneseq
        %v792 = vshrl.u32 %v791, 7
        %v793 = vsub.s32 %v790, %v792
        %v794 = vrot.slane %v787, %v793
        %796 = vst [vmem:[#allocation2] sm:$0xf] %v794
        %v797 = vld [vmem:[#allocation3] sm:$0xff]
        %v798 = vld [vmem:[#allocation3 + $0x8] sm:$0xff]
        %v799 = vld [vmem:[%s328] sm:$0xf]
        %v800 = vld [vmem:[#allocation2] sm:$0xf]
        %v803 = vunpack.c.l.s4 1983009808
        %v804 = vunpack.c.0.s8 %v803
        %v805 = vlaneseq
        %v806 = vshrl.u32 %v805, 7
        %v807 = vsub.s32 %v804, %v806
        %v808 = vrot.slane %v800, %v807
        %v809 = vcombine.high %v808, %v808
        %vm810 = vcmask 31744
        %v812 = vsel %vm810, %v799, 0
        %vm814 = vcmask 1041408
        %v816 = vsel %vm814, %v808, 0
        %v819 = vsel %vm814, %v809, 0
        %821 = vmatprep.subr.bf16.mxu0 %v819
        %822 = vmatpush1.bf16.msra.mxu0 %v816
        %823 = vmatprep.subr.bf16.mxu0 0
        %824 = vmatpush1.bf16.msra.mxu0 0
        %825 = vmatprep.subr.bf16.mxu0 0
        %826 = vmatpush1.bf16.msra.mxu0 0
        %827 = vmatprep.subr.bf16.mxu0 0
        %828 = vmatpush1.bf16.msra.mxu0 0
        %829 = vmatprep.subr.bf16.mxu0 0
        %830 = vmatpush1.bf16.msra.mxu0 0
        %831 = vmatprep.subr.bf16.mxu0 0
        %832 = vmatpush1.bf16.msra.mxu0 0
        %833 = vmatprep.subr.bf16.mxu0 0
        %834 = vmatpush1.bf16.msra.mxu0 0
        %835 = vmatprep.subr.bf16.mxu0 0
        %836 = vmatpush1.bf16.msra.mxu0 0
        %837 = vmatprep.subr.bf16.mxu0 0
        %838 = vmatpush1.bf16.msra.mxu0 0
        %839 = vmatprep.subr.bf16.mxu0 0
        %840 = vmatpush1.bf16.msra.mxu0 0
        %841 = vmatprep.subr.bf16.mxu0 0
        %842 = vmatpush1.bf16.msra.mxu0 0
        %843 = vmatprep.subr.bf16.mxu0 0
        %844 = vmatpush1.bf16.msra.mxu0 0
        %845 = vmatprep.subr.bf16.mxu0 0
        %846 = vmatpush1.bf16.msra.mxu0 0
        %847 = vmatprep.subr.bf16.mxu0 0
        %848 = vmatpush1.bf16.msra.mxu0 0
        %849 = vmatprep.subr.bf16.mxu0 0
        %850 = vmatpush1.bf16.msra.mxu0 0
        %851 = vmatprep.subr.bf16.mxu0 0
        %852 = vmatpush1.bf16.msra.mxu0 0
        %853 = vmatprep.mubr.bf16.mxu0 0
        %854 = vmatmul.mubr.bf16.gmra.mrb[0].mxu0 %v812
        %v855 = vpop.f32.mrb[0].mxu0
        %v856 = vadd.f32 0.0, %v855
        %v857 = vpop.f32.mrb[0].mxu0
        %v858 = vadd.f32 0.0, %v857
        %v859 = vpop.f32.mrb[0].mxu0
        %v860 = vpop.f32.mrb[0].mxu0
        %861 = vdwg.mxu0
        %v862 = vadd.f32 %v797, %v856
        %v863 = vadd.f32 %v798, %v858
        %864 = vst [vmem:[#allocation3] sm:$0xff] %v862
        %865 = vst [vmem:[#allocation3 + $0x8] sm:$0xff] %v863
        %s866 = scalar_lea.vmem %s2, 8
        %v867 = vld [vmem:[%s866] sm:$0xf]
        %v868 = vld [vmem:[%s866 + $0x4] sm:$0xf]
        %v871 = vunpack.c.l.b16 %v867
        %v872 = vunpack.c.l.b16 %v868
        %v873 = vpack.c.b16 %v872, %v871
        %v876 = vsel %vm373, %v464, 0
        %v879 = vsel %vm373, %v480, 0
        %v882 = vsel %vm373, %v496, 0
        %v885 = vsel %vm373, %v512, 0
        %887 = vmatprep.subr.bf16.mxu0 0
        %888 = vmatpush1.bf16.msra.mxu0 %v873
        %889 = vmatprep.subr.bf16.mxu0 0
        %890 = vmatpush1.bf16.msra.mxu0 0
        %891 = vmatprep.subr.bf16.mxu0 0
        %892 = vmatpush1.bf16.msra.mxu0 0
        %893 = vmatprep.subr.bf16.mxu0 0
        %894 = vmatpush1.bf16.msra.mxu0 0
        %895 = vmatprep.subr.bf16.mxu0 0
        %896 = vmatpush1.bf16.msra.mxu0 0
        %897 = vmatprep.subr.bf16.mxu0 0
        %898 = vmatpush1.bf16.msra.mxu0 0
        %899 = vmatprep.subr.bf16.mxu0 0
        %900 = vmatpush1.bf16.msra.mxu0 0
        %901 = vmatprep.subr.bf16.mxu0 0
        %902 = vmatpush1.bf16.msra.mxu0 0
        %903 = vmatprep.subr.bf16.mxu0 0
        %904 = vmatpush1.bf16.msra.mxu0 0
        %905 = vmatprep.subr.bf16.mxu0 0
        %906 = vmatpush1.bf16.msra.mxu0 0
        %907 = vmatprep.subr.bf16.mxu0 0
        %908 = vmatpush1.bf16.msra.mxu0 0
        %909 = vmatprep.subr.bf16.mxu0 0
        %910 = vmatpush1.bf16.msra.mxu0 0
        %911 = vmatprep.subr.bf16.mxu0 0
        %912 = vmatpush1.bf16.msra.mxu0 0
        %913 = vmatprep.subr.bf16.mxu0 0
        %914 = vmatpush1.bf16.msra.mxu0 0
        %915 = vmatprep.subr.bf16.mxu0 0
        %916 = vmatpush1.bf16.msra.mxu0 0
        %917 = vmatprep.subr.bf16.mxu0 0
        %918 = vmatpush1.bf16.msra.mxu0 0
        %919 = vmatprep.mubr.bf16.mxu0 0
        %920 = vmatmul.mubr.bf16.gmra.mrb[0].mxu0 %v876
        %v921 = vpop.f32.mrb[0].mxu0
        %v922 = vadd.f32 0.0, %v921
        %v923 = vpop.f32.mrb[0].mxu0
        %v924 = vpop.f32.mrb[0].mxu0
        %v925 = vadd.f32 0.0, %v924
        %v926 = vpop.f32.mrb[0].mxu0
        %927 = vmatprep.mubr.bf16.mxu0 0
        %928 = vmatmul.mubr.bf16.gmra.mrb[0].mxu0 %v879
        %v929 = vpop.f32.mrb[0].mxu0
        %v930 = vadd.f32 0.0, %v929
        %v931 = vpop.f32.mrb[0].mxu0
        %v932 = vpop.f32.mrb[0].mxu0
        %v933 = vadd.f32 0.0, %v932
        %v934 = vpop.f32.mrb[0].mxu0
        %935 = vmatprep.mubr.bf16.mxu0 0
        %936 = vmatmul.mubr.bf16.gmra.mrb[0].mxu0 %v882
        %v937 = vpop.f32.mrb[0].mxu0
        %v938 = vadd.f32 0.0, %v937
        %v939 = vpop.f32.mrb[0].mxu0
        %v940 = vpop.f32.mrb[0].mxu0
        %v941 = vadd.f32 0.0, %v940
        %v942 = vpop.f32.mrb[0].mxu0
        %943 = vmatprep.mubr.bf16.mxu0 0
        %944 = vmatmul.mubr.bf16.gmra.mrb[0].mxu0 %v885
        %v945 = vpop.f32.mrb[0].mxu0
        %v946 = vadd.f32 0.0, %v945
        %v947 = vpop.f32.mrb[0].mxu0
        %v948 = vpop.f32.mrb[0].mxu0
        %v949 = vadd.f32 0.0, %v948
        %v950 = vpop.f32.mrb[0].mxu0
        %951 = vdwg.mxu0
        %v956 = vrot.slane %v930, 7
        %v957 = vsel %vm609, %v956, %v922
        %v958 = vrot.slane %v938, 6
        %v959 = vsel %vm612, %v958, %v957
        %v960 = vrot.slane %v946, 5
        %v961 = vsel %vm615, %v960, %v959
        %v963 = vrot.slane %v922, 1
        %v964 = vsel %vm609, %v930, %v963
        %v965 = vrot.slane %v938, 7
        %v966 = vsel %vm612, %v965, %v964
        %v967 = vrot.slane %v946, 6
        %v968 = vsel %vm615, %v967, %v966
        %969 = vrot.lane.b32.xlu0 %v968, 16
        %v970 = vpop.permute.xlu0 %969
        %v972 = vrot.slane %v922, 2
        %v973 = vrot.slane %v930, 1
        %v974 = vsel %vm609, %v973, %v972
        %v975 = vsel %vm612, %v938, %v974
        %v976 = vrot.slane %v946, 7
        %v977 = vsel %vm615, %v976, %v975
        %978 = vrot.lane.b32.xlu0 %v977, 32
        %v979 = vpop.permute.xlu0 %978
        %v981 = vrot.slane %v922, 3
        %v982 = vrot.slane %v930, 2
        %v983 = vsel %vm609, %v982, %v981
        %v984 = vrot.slane %v938, 1
        %v985 = vsel %vm612, %v984, %v983
        %v986 = vsel %vm615, %v946, %v985
        %987 = vrot.lane.b32.xlu0 %v986, 48
        %v988 = vpop.permute.xlu0 %987
        %v990 = vrot.slane %v922, 4
        %v991 = vrot.slane %v930, 3
        %v992 = vsel %vm609, %v991, %v990
        %v993 = vrot.slane %v938, 2
        %v994 = vsel %vm612, %v993, %v992
        %v995 = vrot.slane %v946, 1
        %v996 = vsel %vm615, %v995, %v994
        %997 = vrot.lane.b32.xlu0 %v996, 64
        %v998 = vpop.permute.xlu0 %997
        %v1000 = vrot.slane %v922, 5
        %v1001 = vrot.slane %v930, 4
        %v1002 = vsel %vm609, %v1001, %v1000
        %v1003 = vrot.slane %v938, 3
        %v1004 = vsel %vm612, %v1003, %v1002
        %v1005 = vrot.slane %v946, 2
        %v1006 = vsel %vm615, %v1005, %v1004
        %1007 = vrot.lane.b32.xlu0 %v1006, 80
        %v1008 = vpop.permute.xlu0 %1007
        %v1010 = vrot.slane %v922, 6
        %v1011 = vrot.slane %v930, 5
        %v1012 = vsel %vm609, %v1011, %v1010
        %v1013 = vrot.slane %v938, 4
        %v1014 = vsel %vm612, %v1013, %v1012
        %v1015 = vrot.slane %v946, 3
        %v1016 = vsel %vm615, %v1015, %v1014
        %1017 = vrot.lane.b32.xlu0 %v1016, 96
        %v1018 = vpop.permute.xlu0 %1017
        %v1020 = vrot.slane %v922, 7
        %v1021 = vrot.slane %v930, 6
        %v1022 = vsel %vm609, %v1021, %v1020
        %v1023 = vrot.slane %v938, 5
        %v1024 = vsel %vm612, %v1023, %v1022
        %v1025 = vrot.slane %v946, 4
        %v1026 = vsel %vm615, %v1025, %v1024
        %1027 = vrot.lane.b32.xlu0 %v1026, 112
        %v1028 = vpop.permute.xlu0 %1027
        %v1034 = vrot.slane %v933, 7
        %v1035 = vsel %vm609, %v1034, %v925
        %v1036 = vrot.slane %v941, 6
        %v1037 = vsel %vm612, %v1036, %v1035
        %v1038 = vrot.slane %v949, 5
        %v1039 = vsel %vm615, %v1038, %v1037
        %v1041 = vrot.slane %v925, 1
        %v1042 = vsel %vm609, %v933, %v1041
        %v1043 = vrot.slane %v941, 7
        %v1044 = vsel %vm612, %v1043, %v1042
        %v1045 = vrot.slane %v949, 6
        %v1046 = vsel %vm615, %v1045, %v1044
        %1047 = vrot.lane.b32.xlu0 %v1046, 16
        %v1048 = vpop.permute.xlu0 %1047
        %v1050 = vrot.slane %v925, 2
        %v1051 = vrot.slane %v933, 1
        %v1052 = vsel %vm609, %v1051, %v1050
        %v1053 = vsel %vm612, %v941, %v1052
        %v1054 = vrot.slane %v949, 7
        %v1055 = vsel %vm615, %v1054, %v1053
        %1056 = vrot.lane.b32.xlu0 %v1055, 32
        %v1057 = vpop.permute.xlu0 %1056
        %v1059 = vrot.slane %v925, 3
        %v1060 = vrot.slane %v933, 2
        %v1061 = vsel %vm609, %v1060, %v1059
        %v1062 = vrot.slane %v941, 1
        %v1063 = vsel %vm612, %v1062, %v1061
        %v1064 = vsel %vm615, %v949, %v1063
        %1065 = vrot.lane.b32.xlu0 %v1064, 48
        %v1066 = vpop.permute.xlu0 %1065
        %v1068 = vrot.slane %v925, 4
        %v1069 = vrot.slane %v933, 3
        %v1070 = vsel %vm609, %v1069, %v1068
        %v1071 = vrot.slane %v941, 2
        %v1072 = vsel %vm612, %v1071, %v1070
        %v1073 = vrot.slane %v949, 1
        %v1074 = vsel %vm615, %v1073, %v1072
        %1075 = vrot.lane.b32.xlu0 %v1074, 64
        %v1076 = vpop.permute.xlu0 %1075
        %v1078 = vrot.slane %v925, 5
        %v1079 = vrot.slane %v933, 4
        %v1080 = vsel %vm609, %v1079, %v1078
        %v1081 = vrot.slane %v941, 3
        %v1082 = vsel %vm612, %v1081, %v1080
        %v1083 = vrot.slane %v949, 2
        %v1084 = vsel %vm615, %v1083, %v1082
        %1085 = vrot.lane.b32.xlu0 %v1084, 80
        %v1086 = vpop.permute.xlu0 %1085
        %v1088 = vrot.slane %v925, 6
        %v1089 = vrot.slane %v933, 5
        %v1090 = vsel %vm609, %v1089, %v1088
        %v1091 = vrot.slane %v941, 4
        %v1092 = vsel %vm612, %v1091, %v1090
        %v1093 = vrot.slane %v949, 3
        %v1094 = vsel %vm615, %v1093, %v1092
        %1095 = vrot.lane.b32.xlu0 %v1094, 96
        %v1096 = vpop.permute.xlu0 %1095
        %v1098 = vrot.slane %v925, 7
        %v1099 = vrot.slane %v933, 6
        %v1100 = vsel %vm609, %v1099, %v1098
        %v1101 = vrot.slane %v941, 5
        %v1102 = vsel %vm612, %v1101, %v1100
        %v1103 = vrot.slane %v949, 4
        %v1104 = vsel %vm615, %v1103, %v1102
        %1105 = vrot.lane.b32.xlu0 %v1104, 112
        %v1106 = vpop.permute.xlu0 %1105
        %v1108 = vsel %vm373, %v961, %v970
        %v1109 = vsel %vm764, %v1108, %v979
        %v1110 = vsel %vm766, %v1109, %v988
        %v1111 = vsel %vm768, %v1110, %v998
        %v1112 = vsel %vm770, %v1111, %v1008
        %v1113 = vsel %vm772, %v1112, %v1018
        %v1114 = vsel %vm774, %v1113, %v1028
        %v1115 = vsel %vm373, %v1039, %v1048
        %v1116 = vsel %vm764, %v1115, %v1057
        %v1117 = vsel %vm766, %v1116, %v1066
        %v1118 = vsel %vm768, %v1117, %v1076
        %v1119 = vsel %vm770, %v1118, %v1086
        %v1120 = vsel %vm772, %v1119, %v1096
        %v1121 = vsel %vm774, %v1120, %v1106
        %v1122 = vpack.c.bf16 %v1114, %v1114
        %v1123 = vpack.c.bf16 %v1121, %v1121
        %v1126 = vcombine.low %v1122, %v1123
        %v1128 = vunpack.c.l.s4 1983009808
        %v1129 = vunpack.c.0.s8 %v1128
        %v1130 = vlaneseq
        %v1131 = vshrl.u32 %v1130, 7
        %v1132 = vsub.s32 %v1129, %v1131
        %v1133 = vrot.slane %v1126, %v1132
        %1135 = vst [vmem:[#allocation2] sm:$0xf] %v1133
        %v1136 = vld [vmem:[#allocation3] sm:$0xff]
        %v1137 = vld [vmem:[#allocation3 + $0x8] sm:$0xff]
        %s1138 = scalar_lea.vmem %s328, 4
        %v1139 = vld [vmem:[%s1138] sm:$0xf]
        %v1140 = vld [vmem:[#allocation2] sm:$0xf]
        %v1143 = vunpack.c.l.s4 1983009808
        %v1144 = vunpack.c.0.s8 %v1143
        %v1145 = vlaneseq
        %v1146 = vshrl.u32 %v1145, 7
        %v1147 = vsub.s32 %v1144, %v1146
        %v1148 = vrot.slane %v1140, %v1147
        %v1149 = vcombine.high %v1148, %v1148
        %v1151 = vsel %vm810, %v1139, 0
        %v1154 = vsel %vm814, %v1148, 0
        %v1157 = vsel %vm814, %v1149, 0
        %1159 = vmatprep.subr.bf16.mxu0 %v1157
        %1160 = vmatpush1.bf16.msra.mxu0 %v1154
        %1161 = vmatprep.subr.bf16.mxu0 0
        %1162 = vmatpush1.bf16.msra.mxu0 0
        %1163 = vmatprep.subr.bf16.mxu0 0
        %1164 = vmatpush1.bf16.msra.mxu0 0
        %1165 = vmatprep.subr.bf16.mxu0 0
        %1166 = vmatpush1.bf16.msra.mxu0 0
        %1167 = vmatprep.subr.bf16.mxu0 0
        %1168 = vmatpush1.bf16.msra.mxu0 0
        %1169 = vmatprep.subr.bf16.mxu0 0
        %1170 = vmatpush1.bf16.msra.mxu0 0
        %1171 = vmatprep.subr.bf16.mxu0 0
        %1172 = vmatpush1.bf16.msra.mxu0 0
        %1173 = vmatprep.subr.bf16.mxu0 0
        %1174 = vmatpush1.bf16.msra.mxu0 0
        %1175 = vmatprep.subr.bf16.mxu0 0
        %1176 = vmatpush1.bf16.msra.mxu0 0
        %1177 = vmatprep.subr.bf16.mxu0 0
        %1178 = vmatpush1.bf16.msra.mxu0 0
        %1179 = vmatprep.subr.bf16.mxu0 0
        %1180 = vmatpush1.bf16.msra.mxu0 0
        %1181 = vmatprep.subr.bf16.mxu0 0
        %1182 = vmatpush1.bf16.msra.mxu0 0
        %1183 = vmatprep.subr.bf16.mxu0 0
        %1184 = vmatpush1.bf16.msra.mxu0 0
        %1185 = vmatprep.subr.bf16.mxu0 0
        %1186 = vmatpush1.bf16.msra.mxu0 0
        %1187 = vmatprep.subr.bf16.mxu0 0
        %1188 = vmatpush1.bf16.msra.mxu0 0
        %1189 = vmatprep.subr.bf16.mxu0 0
        %1190 = vmatpush1.bf16.msra.mxu0 0
        %1191 = vmatprep.mubr.bf16.mxu0 0
        %1192 = vmatmul.mubr.bf16.gmra.mrb[0].mxu0 %v1151
        %v1193 = vpop.f32.mrb[0].mxu0
        %v1194 = vadd.f32 0.0, %v1193
        %v1195 = vpop.f32.mrb[0].mxu0
        %v1196 = vadd.f32 0.0, %v1195
        %v1197 = vpop.f32.mrb[0].mxu0
        %v1198 = vpop.f32.mrb[0].mxu0
        %1199 = vdwg.mxu0
        %v1200 = vadd.f32 %v1136, %v1194
        %v1201 = vadd.f32 %v1137, %v1196
        %1202 = vst [vmem:[#allocation3] sm:$0xff] %v1200
        %1203 = vst [vmem:[#allocation3 + $0x8] sm:$0xff] %v1201
        %s1204 = scalar_lea.vmem %s2, 16
        %v1205 = vld [vmem:[%s1204] sm:$0xf]
        %v1206 = vld [vmem:[%s1204 + $0x4] sm:$0xf]
        %v1209 = vunpack.c.l.b16 %v1205
        %v1210 = vunpack.c.l.b16 %v1206
        %v1211 = vpack.c.b16 %v1210, %v1209
        %v1214 = vsel %vm373, %v465, 0
        %v1217 = vsel %vm373, %v481, 0
        %v1220 = vsel %vm373, %v497, 0
        %v1223 = vsel %vm373, %v513, 0
        %1225 = vmatprep.subr.bf16.mxu0 0
        %1226 = vmatpush1.bf16.msra.mxu0 %v1211
        %1227 = vmatprep.subr.bf16.mxu0 0
        %1228 = vmatpush1.bf16.msra.mxu0 0
        %1229 = vmatprep.subr.bf16.mxu0 0
        %1230 = vmatpush1.bf16.msra.mxu0 0
        %1231 = vmatprep.subr.bf16.mxu0 0
        %1232 = vmatpush1.bf16.msra.mxu0 0
        %1233 = vmatprep.subr.bf16.mxu0 0
        %1234 = vmatpush1.bf16.msra.mxu0 0
        %1235 = vmatprep.subr.bf16.mxu0 0
        %1236 = vmatpush1.bf16.msra.mxu0 0
        %1237 = vmatprep.subr.bf16.mxu0 0
        %1238 = vmatpush1.bf16.msra.mxu0 0
        %1239 = vmatprep.subr.bf16.mxu0 0
        %1240 = vmatpush1.bf16.msra.mxu0 0
        %1241 = vmatprep.subr.bf16.mxu0 0
        %1242 = vmatpush1.bf16.msra.mxu0 0
        %1243 = vmatprep.subr.bf16.mxu0 0
        %1244 = vmatpush1.bf16.msra.mxu0 0
        %1245 = vmatprep.subr.bf16.mxu0 0
        %1246 = vmatpush1.bf16.msra.mxu0 0
        %1247 = vmatprep.subr.bf16.mxu0 0
        %1248 = vmatpush1.bf16.msra.mxu0 0
        %1249 = vmatprep.subr.bf16.mxu0 0
        %1250 = vmatpush1.bf16.msra.mxu0 0
        %1251 = vmatprep.subr.bf16.mxu0 0
        %1252 = vmatpush1.bf16.msra.mxu0 0
        %1253 = vmatprep.subr.bf16.mxu0 0
        %1254 = vmatpush1.bf16.msra.mxu0 0
        %1255 = vmatprep.subr.bf16.mxu0 0
        %1256 = vmatpush1.bf16.msra.mxu0 0
        %1257 = vmatprep.mubr.bf16.mxu0 0
        %1258 = vmatmul.mubr.bf16.gmra.mrb[0].mxu0 %v1214
        %v1259 = vpop.f32.mrb[0].mxu0
        %v1260 = vadd.f32 0.0, %v1259
        %v1261 = vpop.f32.mrb[0].mxu0
        %v1262 = vpop.f32.mrb[0].mxu0
        %v1263 = vadd.f32 0.0, %v1262
        %v1264 = vpop.f32.mrb[0].mxu0
        %1265 = vmatprep.mubr.bf16.mxu0 0
        %1266 = vmatmul.mubr.bf16.gmra.mrb[0].mxu0 %v1217
        %v1267 = vpop.f32.mrb[0].mxu0
        %v1268 = vadd.f32 0.0, %v1267
        %v1269 = vpop.f32.mrb[0].mxu0
        %v1270 = vpop.f32.mrb[0].mxu0
        %v1271 = vadd.f32 0.0, %v1270
        %v1272 = vpop.f32.mrb[0].mxu0
        %1273 = vmatprep.mubr.bf16.mxu0 0
        %1274 = vmatmul.mubr.bf16.gmra.mrb[0].mxu0 %v1220
        %v1275 = vpop.f32.mrb[0].mxu0
        %v1276 = vadd.f32 0.0, %v1275
        %v1277 = vpop.f32.mrb[0].mxu0
        %v1278 = vpop.f32.mrb[0].mxu0
        %v1279 = vadd.f32 0.0, %v1278
        %v1280 = vpop.f32.mrb[0].mxu0
        %1281 = vmatprep.mubr.bf16.mxu0 0
        %1282 = vmatmul.mubr.bf16.gmra.mrb[0].mxu0 %v1223
        %v1283 = vpop.f32.mrb[0].mxu0
        %v1284 = vadd.f32 0.0, %v1283
        %v1285 = vpop.f32.mrb[0].mxu0
        %v1286 = vpop.f32.mrb[0].mxu0
        %v1287 = vadd.f32 0.0, %v1286
        %v1288 = vpop.f32.mrb[0].mxu0
        %1289 = vdwg.mxu0
        %v1294 = vrot.slane %v1268, 7
        %v1295 = vsel %vm609, %v1294, %v1260
        %v1296 = vrot.slane %v1276, 6
        %v1297 = vsel %vm612, %v1296, %v1295
        %v1298 = vrot.slane %v1284, 5
        %v1299 = vsel %vm615, %v1298, %v1297
        %v1301 = vrot.slane %v1260, 1
        %v1302 = vsel %vm609, %v1268, %v1301
        %v1303 = vrot.slane %v1276, 7
        %v1304 = vsel %vm612, %v1303, %v1302
        %v1305 = vrot.slane %v1284, 6
        %v1306 = vsel %vm615, %v1305, %v1304
        %1307 = vrot.lane.b32.xlu0 %v1306, 16
        %v1308 = vpop.permute.xlu0 %1307
        %v1310 = vrot.slane %v1260, 2
        %v1311 = vrot.slane %v1268, 1
        %v1312 = vsel %vm609, %v1311, %v1310
        %v1313 = vsel %vm612, %v1276, %v1312
        %v1314 = vrot.slane %v1284, 7
        %v1315 = vsel %vm615, %v1314, %v1313
        %1316 = vrot.lane.b32.xlu0 %v1315, 32
        %v1317 = vpop.permute.xlu0 %1316
        %v1319 = vrot.slane %v1260, 3
        %v1320 = vrot.slane %v1268, 2
        %v1321 = vsel %vm609, %v1320, %v1319
        %v1322 = vrot.slane %v1276, 1
        %v1323 = vsel %vm612, %v1322, %v1321
        %v1324 = vsel %vm615, %v1284, %v1323
        %1325 = vrot.lane.b32.xlu0 %v1324, 48
        %v1326 = vpop.permute.xlu0 %1325
        %v1328 = vrot.slane %v1260, 4
        %v1329 = vrot.slane %v1268, 3
        %v1330 = vsel %vm609, %v1329, %v1328
        %v1331 = vrot.slane %v1276, 2
        %v1332 = vsel %vm612, %v1331, %v1330
        %v1333 = vrot.slane %v1284, 1
        %v1334 = vsel %vm615, %v1333, %v1332
        %1335 = vrot.lane.b32.xlu0 %v1334, 64
        %v1336 = vpop.permute.xlu0 %1335
        %v1338 = vrot.slane %v1260, 5
        %v1339 = vrot.slane %v1268, 4
        %v1340 = vsel %vm609, %v1339, %v1338
        %v1341 = vrot.slane %v1276, 3
        %v1342 = vsel %vm612, %v1341, %v1340
        %v1343 = vrot.slane %v1284, 2
        %v1344 = vsel %vm615, %v1343, %v1342
        %1345 = vrot.lane.b32.xlu0 %v1344, 80
        %v1346 = vpop.permute.xlu0 %1345
        %v1348 = vrot.slane %v1260, 6
        %v1349 = vrot.slane %v1268, 5
        %v1350 = vsel %vm609, %v1349, %v1348
        %v1351 = vrot.slane %v1276, 4
        %v1352 = vsel %vm612, %v1351, %v1350
        %v1353 = vrot.slane %v1284, 3
        %v1354 = vsel %vm615, %v1353, %v1352
        %1355 = vrot.lane.b32.xlu0 %v1354, 96
        %v1356 = vpop.permute.xlu0 %1355
        %v1358 = vrot.slane %v1260, 7
        %v1359 = vrot.slane %v1268, 6
        %v1360 = vsel %vm609, %v1359, %v1358
        %v1361 = vrot.slane %v1276, 5
        %v1362 = vsel %vm612, %v1361, %v1360
        %v1363 = vrot.slane %v1284, 4
        %v1364 = vsel %vm615, %v1363, %v1362
        %1365 = vrot.lane.b32.xlu0 %v1364, 112
        %v1366 = vpop.permute.xlu0 %1365
        %v1372 = vrot.slane %v1271, 7
        %v1373 = vsel %vm609, %v1372, %v1263
        %v1374 = vrot.slane %v1279, 6
        %v1375 = vsel %vm612, %v1374, %v1373
        %v1376 = vrot.slane %v1287, 5
        %v1377 = vsel %vm615, %v1376, %v1375
        %v1379 = vrot.slane %v1263, 1
        %v1380 = vsel %vm609, %v1271, %v1379
        %v1381 = vrot.slane %v1279, 7
        %v1382 = vsel %vm612, %v1381, %v1380
        %v1383 = vrot.slane %v1287, 6
        %v1384 = vsel %vm615, %v1383, %v1382
        %1385 = vrot.lane.b32.xlu0 %v1384, 16
        %v1386 = vpop.permute.xlu0 %1385
        %v1388 = vrot.slane %v1263, 2
        %v1389 = vrot.slane %v1271, 1
        %v1390 = vsel %vm609, %v1389, %v1388
        %v1391 = vsel %vm612, %v1279, %v1390
        %v1392 = vrot.slane %v1287, 7
        %v1393 = vsel %vm615, %v1392, %v1391
        %1394 = vrot.lane.b32.xlu0 %v1393, 32
        %v1395 = vpop.permute.xlu0 %1394
        %v1397 = vrot.slane %v1263, 3
        %v1398 = vrot.slane %v1271, 2
        %v1399 = vsel %vm609, %v1398, %v1397
        %v1400 = vrot.slane %v1279, 1
        %v1401 = vsel %vm612, %v1400, %v1399
        %v1402 = vsel %vm615, %v1287, %v1401
        %1403 = vrot.lane.b32.xlu0 %v1402, 48
        %v1404 = vpop.permute.xlu0 %1403
        %v1406 = vrot.slane %v1263, 4
        %v1407 = vrot.slane %v1271, 3
        %v1408 = vsel %vm609, %v1407, %v1406
        %v1409 = vrot.slane %v1279, 2
        %v1410 = vsel %vm612, %v1409, %v1408
        %v1411 = vrot.slane %v1287, 1
        %v1412 = vsel %vm615, %v1411, %v1410
        %1413 = vrot.lane.b32.xlu0 %v1412, 64
        %v1414 = vpop.permute.xlu0 %1413
        %v1416 = vrot.slane %v1263, 5
        %v1417 = vrot.slane %v1271, 4
        %v1418 = vsel %vm609, %v1417, %v1416
        %v1419 = vrot.slane %v1279, 3
        %v1420 = vsel %vm612, %v1419, %v1418
        %v1421 = vrot.slane %v1287, 2
        %v1422 = vsel %vm615, %v1421, %v1420
        %1423 = vrot.lane.b32.xlu0 %v1422, 80
        %v1424 = vpop.permute.xlu0 %1423
        %v1426 = vrot.slane %v1263, 6
        %v1427 = vrot.slane %v1271, 5
        %v1428 = vsel %vm609, %v1427, %v1426
        %v1429 = vrot.slane %v1279, 4
        %v1430 = vsel %vm612, %v1429, %v1428
        %v1431 = vrot.slane %v1287, 3
        %v1432 = vsel %vm615, %v1431, %v1430
        %1433 = vrot.lane.b32.xlu0 %v1432, 96
        %v1434 = vpop.permute.xlu0 %1433
        %v1436 = vrot.slane %v1263, 7
        %v1437 = vrot.slane %v1271, 6
        %v1438 = vsel %vm609, %v1437, %v1436
        %v1439 = vrot.slane %v1279, 5
        %v1440 = vsel %vm612, %v1439, %v1438
        %v1441 = vrot.slane %v1287, 4
        %v1442 = vsel %vm615, %v1441, %v1440
        %1443 = vrot.lane.b32.xlu0 %v1442, 112
        %v1444 = vpop.permute.xlu0 %1443
        %v1446 = vsel %vm373, %v1299, %v1308
        %v1447 = vsel %vm764, %v1446, %v1317
        %v1448 = vsel %vm766, %v1447, %v1326
        %v1449 = vsel %vm768, %v1448, %v1336
        %v1450 = vsel %vm770, %v1449, %v1346
        %v1451 = vsel %vm772, %v1450, %v1356
        %v1452 = vsel %vm774, %v1451, %v1366
        %v1453 = vsel %vm373, %v1377, %v1386
        %v1454 = vsel %vm764, %v1453, %v1395
        %v1455 = vsel %vm766, %v1454, %v1404
        %v1456 = vsel %vm768, %v1455, %v1414
        %v1457 = vsel %vm770, %v1456, %v1424
        %v1458 = vsel %vm772, %v1457, %v1434
        %v1459 = vsel %vm774, %v1458, %v1444
        %v1460 = vpack.c.bf16 %v1452, %v1452
        %v1461 = vpack.c.bf16 %v1459, %v1459
        %v1464 = vcombine.low %v1460, %v1461
        %v1466 = vunpack.c.l.s4 1983009808
        %v1467 = vunpack.c.0.s8 %v1466
        %v1468 = vlaneseq
        %v1469 = vshrl.u32 %v1468, 7
        %v1470 = vsub.s32 %v1467, %v1469
        %v1471 = vrot.slane %v1464, %v1470
        %1473 = vst [vmem:[#allocation2] sm:$0xf] %v1471
        %v1474 = vld [vmem:[#allocation3] sm:$0xff]
        %v1475 = vld [vmem:[#allocation3 + $0x8] sm:$0xff]
        %s1476 = scalar_lea.vmem %s328, 8
        %v1477 = vld [vmem:[%s1476] sm:$0xf]
        %v1478 = vld [vmem:[#allocation2] sm:$0xf]
        %v1481 = vunpack.c.l.s4 1983009808
        %v1482 = vunpack.c.0.s8 %v1481
        %v1483 = vlaneseq
        %v1484 = vshrl.u32 %v1483, 7
        %v1485 = vsub.s32 %v1482, %v1484
        %v1486 = vrot.slane %v1478, %v1485
        %v1487 = vcombine.high %v1486, %v1486
        %v1489 = vsel %vm810, %v1477, 0
        %v1492 = vsel %vm814, %v1486, 0
        %v1495 = vsel %vm814, %v1487, 0
        %1497 = vmatprep.subr.bf16.mxu0 %v1495
        %1498 = vmatpush1.bf16.msra.mxu0 %v1492
        %1499 = vmatprep.subr.bf16.mxu0 0
        %1500 = vmatpush1.bf16.msra.mxu0 0
        %1501 = vmatprep.subr.bf16.mxu0 0
        %1502 = vmatpush1.bf16.msra.mxu0 0
        %1503 = vmatprep.subr.bf16.mxu0 0
        %1504 = vmatpush1.bf16.msra.mxu0 0
        %1505 = vmatprep.subr.bf16.mxu0 0
        %1506 = vmatpush1.bf16.msra.mxu0 0
        %1507 = vmatprep.subr.bf16.mxu0 0
        %1508 = vmatpush1.bf16.msra.mxu0 0
        %1509 = vmatprep.subr.bf16.mxu0 0
        %1510 = vmatpush1.bf16.msra.mxu0 0
        %1511 = vmatprep.subr.bf16.mxu0 0
        %1512 = vmatpush1.bf16.msra.mxu0 0
        %1513 = vmatprep.subr.bf16.mxu0 0
        %1514 = vmatpush1.bf16.msra.mxu0 0
        %1515 = vmatprep.subr.bf16.mxu0 0
        %1516 = vmatpush1.bf16.msra.mxu0 0
        %1517 = vmatprep.subr.bf16.mxu0 0
        %1518 = vmatpush1.bf16.msra.mxu0 0
        %1519 = vmatprep.subr.bf16.mxu0 0
        %1520 = vmatpush1.bf16.msra.mxu0 0
        %1521 = vmatprep.subr.bf16.mxu0 0
        %1522 = vmatpush1.bf16.msra.mxu0 0
        %1523 = vmatprep.subr.bf16.mxu0 0
        %1524 = vmatpush1.bf16.msra.mxu0 0
        %1525 = vmatprep.subr.bf16.mxu0 0
        %1526 = vmatpush1.bf16.msra.mxu0 0
        %1527 = vmatprep.subr.bf16.mxu0 0
        %1528 = vmatpush1.bf16.msra.mxu0 0
        %1529 = vmatprep.mubr.bf16.mxu0 0
        %1530 = vmatmul.mubr.bf16.gmra.mrb[0].mxu0 %v1489
        %v1531 = vpop.f32.mrb[0].mxu0
        %v1532 = vadd.f32 0.0, %v1531
        %v1533 = vpop.f32.mrb[0].mxu0
        %v1534 = vadd.f32 0.0, %v1533
        %v1535 = vpop.f32.mrb[0].mxu0
        %v1536 = vpop.f32.mrb[0].mxu0
        %1537 = vdwg.mxu0
        %v1538 = vadd.f32 %v1474, %v1532
        %v1539 = vadd.f32 %v1475, %v1534
        %1540 = vst [vmem:[#allocation3] sm:$0xff] %v1538
        %1541 = vst [vmem:[#allocation3 + $0x8] sm:$0xff] %v1539
        %s1542 = scalar_lea.vmem %s2, 24
        %v1543 = vld [vmem:[%s1542] sm:$0xf]
        %v1544 = vld [vmem:[%s1542 + $0x4] sm:$0xf]
        %v1547 = vunpack.c.l.b16 %v1543
        %v1548 = vunpack.c.l.b16 %v1544
        %v1549 = vpack.c.b16 %v1548, %v1547
        %v1552 = vsel %vm373, %v466, 0
        %v1555 = vsel %vm373, %v482, 0
        %v1558 = vsel %vm373, %v498, 0
        %v1561 = vsel %vm373, %v514, 0
        %1563 = vmatprep.subr.bf16.mxu0 0
        %1564 = vmatpush1.bf16.msra.mxu0 %v1549
        %1565 = vmatprep.subr.bf16.mxu0 0
        %1566 = vmatpush1.bf16.msra.mxu0 0
        %1567 = vmatprep.subr.bf16.mxu0 0
        %1568 = vmatpush1.bf16.msra.mxu0 0
        %1569 = vmatprep.subr.bf16.mxu0 0
        %1570 = vmatpush1.bf16.msra.mxu0 0
        %1571 = vmatprep.subr.bf16.mxu0 0
        %1572 = vmatpush1.bf16.msra.mxu0 0
        %1573 = vmatprep.subr.bf16.mxu0 0
        %1574 = vmatpush1.bf16.msra.mxu0 0
        %1575 = vmatprep.subr.bf16.mxu0 0
        %1576 = vmatpush1.bf16.msra.mxu0 0
        %1577 = vmatprep.subr.bf16.mxu0 0
        %1578 = vmatpush1.bf16.msra.mxu0 0
        %1579 = vmatprep.subr.bf16.mxu0 0
        %1580 = vmatpush1.bf16.msra.mxu0 0
        %1581 = vmatprep.subr.bf16.mxu0 0
        %1582 = vmatpush1.bf16.msra.mxu0 0
        %1583 = vmatprep.subr.bf16.mxu0 0
        %1584 = vmatpush1.bf16.msra.mxu0 0
        %1585 = vmatprep.subr.bf16.mxu0 0
        %1586 = vmatpush1.bf16.msra.mxu0 0
        %1587 = vmatprep.subr.bf16.mxu0 0
        %1588 = vmatpush1.bf16.msra.mxu0 0
        %1589 = vmatprep.subr.bf16.mxu0 0
        %1590 = vmatpush1.bf16.msra.mxu0 0
        %1591 = vmatprep.subr.bf16.mxu0 0
        %1592 = vmatpush1.bf16.msra.mxu0 0
        %1593 = vmatprep.subr.bf16.mxu0 0
        %1594 = vmatpush1.bf16.msra.mxu0 0
        %1595 = vmatprep.mubr.bf16.mxu0 0
        %1596 = vmatmul.mubr.bf16.gmra.mrb[0].mxu0 %v1552
        %v1597 = vpop.f32.mrb[0].mxu0
        %v1598 = vadd.f32 0.0, %v1597
        %v1599 = vpop.f32.mrb[0].mxu0
        %v1600 = vpop.f32.mrb[0].mxu0
        %v1601 = vadd.f32 0.0, %v1600
        %v1602 = vpop.f32.mrb[0].mxu0
        %1603 = vmatprep.mubr.bf16.mxu0 0
        %1604 = vmatmul.mubr.bf16.gmra.mrb[0].mxu0 %v1555
        %v1605 = vpop.f32.mrb[0].mxu0
        %v1606 = vadd.f32 0.0, %v1605
        %v1607 = vpop.f32.mrb[0].mxu0
        %v1608 = vpop.f32.mrb[0].mxu0
        %v1609 = vadd.f32 0.0, %v1608
        %v1610 = vpop.f32.mrb[0].mxu0
        %1611 = vmatprep.mubr.bf16.mxu0 0
        %1612 = vmatmul.mubr.bf16.gmra.mrb[0].mxu0 %v1558
        %v1613 = vpop.f32.mrb[0].mxu0
        %v1614 = vadd.f32 0.0, %v1613
        %v1615 = vpop.f32.mrb[0].mxu0
        %v1616 = vpop.f32.mrb[0].mxu0
        %v1617 = vadd.f32 0.0, %v1616
        %v1618 = vpop.f32.mrb[0].mxu0
        %1619 = vmatprep.mubr.bf16.mxu0 0
        %1620 = vmatmul.mubr.bf16.gmra.mrb[0].mxu0 %v1561
        %v1621 = vpop.f32.mrb[0].mxu0
        %v1622 = vadd.f32 0.0, %v1621
        %v1623 = vpop.f32.mrb[0].mxu0
        %v1624 = vpop.f32.mrb[0].mxu0
        %v1625 = vadd.f32 0.0, %v1624
        %v1626 = vpop.f32.mrb[0].mxu0
        %1627 = vdwg.mxu0
        %v1632 = vrot.slane %v1606, 7
        %v1633 = vsel %vm609, %v1632, %v1598
        %v1634 = vrot.slane %v1614, 6
        %v1635 = vsel %vm612, %v1634, %v1633
        %v1636 = vrot.slane %v1622, 5
        %v1637 = vsel %vm615, %v1636, %v1635
        %v1639 = vrot.slane %v1598, 1
        %v1640 = vsel %vm609, %v1606, %v1639
        %v1641 = vrot.slane %v1614, 7
        %v1642 = vsel %vm612, %v1641, %v1640
        %v1643 = vrot.slane %v1622, 6
        %v1644 = vsel %vm615, %v1643, %v1642
        %1645 = vrot.lane.b32.xlu0 %v1644, 16
        %v1646 = vpop.permute.xlu0 %1645
        %v1648 = vrot.slane %v1598, 2
        %v1649 = vrot.slane %v1606, 1
        %v1650 = vsel %vm609, %v1649, %v1648
        %v1651 = vsel %vm612, %v1614, %v1650
        %v1652 = vrot.slane %v1622, 7
        %v1653 = vsel %vm615, %v1652, %v1651
        %1654 = vrot.lane.b32.xlu0 %v1653, 32
        %v1655 = vpop.permute.xlu0 %1654
        %v1657 = vrot.slane %v1598, 3
        %v1658 = vrot.slane %v1606, 2
        %v1659 = vsel %vm609, %v1658, %v1657
        %v1660 = vrot.slane %v1614, 1
        %v1661 = vsel %vm612, %v1660, %v1659
        %v1662 = vsel %vm615, %v1622, %v1661
        %1663 = vrot.lane.b32.xlu0 %v1662, 48
        %v1664 = vpop.permute.xlu0 %1663
        %v1666 = vrot.slane %v1598, 4
        %v1667 = vrot.slane %v1606, 3
        %v1668 = vsel %vm609, %v1667, %v1666
        %v1669 = vrot.slane %v1614, 2
        %v1670 = vsel %vm612, %v1669, %v1668
        %v1671 = vrot.slane %v1622, 1
        %v1672 = vsel %vm615, %v1671, %v1670
        %1673 = vrot.lane.b32.xlu0 %v1672, 64
        %v1674 = vpop.permute.xlu0 %1673
        %v1676 = vrot.slane %v1598, 5
        %v1677 = vrot.slane %v1606, 4
        %v1678 = vsel %vm609, %v1677, %v1676
        %v1679 = vrot.slane %v1614, 3
        %v1680 = vsel %vm612, %v1679, %v1678
        %v1681 = vrot.slane %v1622, 2
        %v1682 = vsel %vm615, %v1681, %v1680
        %1683 = vrot.lane.b32.xlu0 %v1682, 80
        %v1684 = vpop.permute.xlu0 %1683
        %v1686 = vrot.slane %v1598, 6
        %v1687 = vrot.slane %v1606, 5
        %v1688 = vsel %vm609, %v1687, %v1686
        %v1689 = vrot.slane %v1614, 4
        %v1690 = vsel %vm612, %v1689, %v1688
        %v1691 = vrot.slane %v1622, 3
        %v1692 = vsel %vm615, %v1691, %v1690
        %1693 = vrot.lane.b32.xlu0 %v1692, 96
        %v1694 = vpop.permute.xlu0 %1693
        %v1696 = vrot.slane %v1598, 7
        %v1697 = vrot.slane %v1606, 6
        %v1698 = vsel %vm609, %v1697, %v1696
        %v1699 = vrot.slane %v1614, 5
        %v1700 = vsel %vm612, %v1699, %v1698
        %v1701 = vrot.slane %v1622, 4
        %v1702 = vsel %vm615, %v1701, %v1700
        %1703 = vrot.lane.b32.xlu0 %v1702, 112
        %v1704 = vpop.permute.xlu0 %1703
        %v1710 = vrot.slane %v1609, 7
        %v1711 = vsel %vm609, %v1710, %v1601
        %v1712 = vrot.slane %v1617, 6
        %v1713 = vsel %vm612, %v1712, %v1711
        %v1714 = vrot.slane %v1625, 5
        %v1715 = vsel %vm615, %v1714, %v1713
        %v1717 = vrot.slane %v1601, 1
        %v1718 = vsel %vm609, %v1609, %v1717
        %v1719 = vrot.slane %v1617, 7
        %v1720 = vsel %vm612, %v1719, %v1718
        %v1721 = vrot.slane %v1625, 6
        %v1722 = vsel %vm615, %v1721, %v1720
        %1723 = vrot.lane.b32.xlu0 %v1722, 16
        %v1724 = vpop.permute.xlu0 %1723
        %v1726 = vrot.slane %v1601, 2
        %v1727 = vrot.slane %v1609, 1
        %v1728 = vsel %vm609, %v1727, %v1726
        %v1729 = vsel %vm612, %v1617, %v1728
        %v1730 = vrot.slane %v1625, 7
        %v1731 = vsel %vm615, %v1730, %v1729
        %1732 = vrot.lane.b32.xlu0 %v1731, 32
        %v1733 = vpop.permute.xlu0 %1732
        %v1735 = vrot.slane %v1601, 3
        %v1736 = vrot.slane %v1609, 2
        %v1737 = vsel %vm609, %v1736, %v1735
        %v1738 = vrot.slane %v1617, 1
        %v1739 = vsel %vm612, %v1738, %v1737
        %v1740 = vsel %vm615, %v1625, %v1739
        %1741 = vrot.lane.b32.xlu0 %v1740, 48
        %v1742 = vpop.permute.xlu0 %1741
        %v1744 = vrot.slane %v1601, 4
        %v1745 = vrot.slane %v1609, 3
        %v1746 = vsel %vm609, %v1745, %v1744
        %v1747 = vrot.slane %v1617, 2
        %v1748 = vsel %vm612, %v1747, %v1746
        %v1749 = vrot.slane %v1625, 1
        %v1750 = vsel %vm615, %v1749, %v1748
        %1751 = vrot.lane.b32.xlu0 %v1750, 64
        %v1752 = vpop.permute.xlu0 %1751
        %v1754 = vrot.slane %v1601, 5
        %v1755 = vrot.slane %v1609, 4
        %v1756 = vsel %vm609, %v1755, %v1754
        %v1757 = vrot.slane %v1617, 3
        %v1758 = vsel %vm612, %v1757, %v1756
        %v1759 = vrot.slane %v1625, 2
        %v1760 = vsel %vm615, %v1759, %v1758
        %1761 = vrot.lane.b32.xlu0 %v1760, 80
        %v1762 = vpop.permute.xlu0 %1761
        %v1764 = vrot.slane %v1601, 6
        %v1765 = vrot.slane %v1609, 5
        %v1766 = vsel %vm609, %v1765, %v1764
        %v1767 = vrot.slane %v1617, 4
        %v1768 = vsel %vm612, %v1767, %v1766
        %v1769 = vrot.slane %v1625, 3
        %v1770 = vsel %vm615, %v1769, %v1768
        %1771 = vrot.lane.b32.xlu0 %v1770, 96
        %v1772 = vpop.permute.xlu0 %1771
        %v1774 = vrot.slane %v1601, 7
        %v1775 = vrot.slane %v1609, 6
        %v1776 = vsel %vm609, %v1775, %v1774
        %v1777 = vrot.slane %v1617, 5
        %v1778 = vsel %vm612, %v1777, %v1776
        %v1779 = vrot.slane %v1625, 4
        %v1780 = vsel %vm615, %v1779, %v1778
        %1781 = vrot.lane.b32.xlu0 %v1780, 112
        %v1782 = vpop.permute.xlu0 %1781
        %v1784 = vsel %vm373, %v1637, %v1646
        %v1785 = vsel %vm764, %v1784, %v1655
        %v1786 = vsel %vm766, %v1785, %v1664
        %v1787 = vsel %vm768, %v1786, %v1674
        %v1788 = vsel %vm770, %v1787, %v1684
        %v1789 = vsel %vm772, %v1788, %v1694
        %v1790 = vsel %vm774, %v1789, %v1704
        %v1791 = vsel %vm373, %v1715, %v1724
        %v1792 = vsel %vm764, %v1791, %v1733
        %v1793 = vsel %vm766, %v1792, %v1742
        %v1794 = vsel %vm768, %v1793, %v1752
        %v1795 = vsel %vm770, %v1794, %v1762
        %v1796 = vsel %vm772, %v1795, %v1772
        %v1797 = vsel %vm774, %v1796, %v1782
        %v1798 = vpack.c.bf16 %v1790, %v1790
        %v1799 = vpack.c.bf16 %v1797, %v1797
        %v1802 = vcombine.low %v1798, %v1799
        %v1804 = vunpack.c.l.s4 1983009808
        %v1805 = vunpack.c.0.s8 %v1804
        %v1806 = vlaneseq
        %v1807 = vshrl.u32 %v1806, 7
        %v1808 = vsub.s32 %v1805, %v1807
        %v1809 = vrot.slane %v1802, %v1808
        %1811 = vst [vmem:[#allocation2] sm:$0xf] %v1809
        %v1812 = vld [vmem:[#allocation3] sm:$0xff]
        %v1813 = vld [vmem:[#allocation3 + $0x8] sm:$0xff]
        %s1814 = scalar_lea.vmem %s328, 12
        %v1815 = vld [vmem:[%s1814] sm:$0xf]
        %v1816 = vld [vmem:[#allocation2] sm:$0xf]
        %v1819 = vunpack.c.l.s4 1983009808
        %v1820 = vunpack.c.0.s8 %v1819
        %v1821 = vlaneseq
        %v1822 = vshrl.u32 %v1821, 7
        %v1823 = vsub.s32 %v1820, %v1822
        %v1824 = vrot.slane %v1816, %v1823
        %v1825 = vcombine.high %v1824, %v1824
        %v1827 = vsel %vm810, %v1815, 0
        %v1830 = vsel %vm814, %v1824, 0
        %v1833 = vsel %vm814, %v1825, 0
        %1835 = vmatprep.subr.bf16.mxu0 %v1833
        %1836 = vmatpush1.bf16.msra.mxu0 %v1830
        %1837 = vmatprep.subr.bf16.mxu0 0
        %1838 = vmatpush1.bf16.msra.mxu0 0
        %1839 = vmatprep.subr.bf16.mxu0 0
        %1840 = vmatpush1.bf16.msra.mxu0 0
        %1841 = vmatprep.subr.bf16.mxu0 0
        %1842 = vmatpush1.bf16.msra.mxu0 0
        %1843 = vmatprep.subr.bf16.mxu0 0
        %1844 = vmatpush1.bf16.msra.mxu0 0
        %1845 = vmatprep.subr.bf16.mxu0 0
        %1846 = vmatpush1.bf16.msra.mxu0 0
        %1847 = vmatprep.subr.bf16.mxu0 0
        %1848 = vmatpush1.bf16.msra.mxu0 0
        %1849 = vmatprep.subr.bf16.mxu0 0
        %1850 = vmatpush1.bf16.msra.mxu0 0
        %1851 = vmatprep.subr.bf16.mxu0 0
        %1852 = vmatpush1.bf16.msra.mxu0 0
        %1853 = vmatprep.subr.bf16.mxu0 0
        %1854 = vmatpush1.bf16.msra.mxu0 0
        %1855 = vmatprep.subr.bf16.mxu0 0
        %1856 = vmatpush1.bf16.msra.mxu0 0
        %1857 = vmatprep.subr.bf16.mxu0 0
        %1858 = vmatpush1.bf16.msra.mxu0 0
        %1859 = vmatprep.subr.bf16.mxu0 0
        %1860 = vmatpush1.bf16.msra.mxu0 0
        %1861 = vmatprep.subr.bf16.mxu0 0
        %1862 = vmatpush1.bf16.msra.mxu0 0
        %1863 = vmatprep.subr.bf16.mxu0 0
        %1864 = vmatpush1.bf16.msra.mxu0 0
        %1865 = vmatprep.subr.bf16.mxu0 0
        %1866 = vmatpush1.bf16.msra.mxu0 0
        %1867 = vmatprep.mubr.bf16.mxu0 0
        %1868 = vmatmul.mubr.bf16.gmra.mrb[0].mxu0 %v1827
        %v1869 = vpop.f32.mrb[0].mxu0
        %v1870 = vadd.f32 0.0, %v1869
        %v1871 = vpop.f32.mrb[0].mxu0
        %v1872 = vadd.f32 0.0, %v1871
        %v1873 = vpop.f32.mrb[0].mxu0
        %v1874 = vpop.f32.mrb[0].mxu0
        %1875 = vdwg.mxu0
        %v1876 = vadd.f32 %v1812, %v1870
        %v1877 = vadd.f32 %v1813, %v1872
        %1878 = vst [vmem:[#allocation3] sm:$0xff] %v1876
        %1879 = vst [vmem:[#allocation3 + $0x8] sm:$0xff] %v1877
        %s1880 = scalar_lea.vmem %s2, 32
        %v1881 = vld [vmem:[%s1880] sm:$0xf]
        %v1882 = vld [vmem:[%s1880 + $0x4] sm:$0xf]
        %v1885 = vunpack.c.l.b16 %v1881
        %v1886 = vunpack.c.l.b16 %v1882
        %v1887 = vpack.c.b16 %v1886, %v1885
        %v1890 = vsel %vm373, %v467, 0
        %v1893 = vsel %vm373, %v483, 0
        %v1896 = vsel %vm373, %v499, 0
        %v1899 = vsel %vm373, %v515, 0
        %1901 = vmatprep.subr.bf16.mxu0 0
        %1902 = vmatpush1.bf16.msra.mxu0 %v1887
        %1903 = vmatprep.subr.bf16.mxu0 0
        %1904 = vmatpush1.bf16.msra.mxu0 0
        %1905 = vmatprep.subr.bf16.mxu0 0
        %1906 = vmatpush1.bf16.msra.mxu0 0
        %1907 = vmatprep.subr.bf16.mxu0 0
        %1908 = vmatpush1.bf16.msra.mxu0 0
        %1909 = vmatprep.subr.bf16.mxu0 0
        %1910 = vmatpush1.bf16.msra.mxu0 0
        %1911 = vmatprep.subr.bf16.mxu0 0
        %1912 = vmatpush1.bf16.msra.mxu0 0
        %1913 = vmatprep.subr.bf16.mxu0 0
        %1914 = vmatpush1.bf16.msra.mxu0 0
        %1915 = vmatprep.subr.bf16.mxu0 0
        %1916 = vmatpush1.bf16.msra.mxu0 0
        %1917 = vmatprep.subr.bf16.mxu0 0
        %1918 = vmatpush1.bf16.msra.mxu0 0
        %1919 = vmatprep.subr.bf16.mxu0 0
        %1920 = vmatpush1.bf16.msra.mxu0 0
        %1921 = vmatprep.subr.bf16.mxu0 0
        %1922 = vmatpush1.bf16.msra.mxu0 0
        %1923 = vmatprep.subr.bf16.mxu0 0
        %1924 = vmatpush1.bf16.msra.mxu0 0
        %1925 = vmatprep.subr.bf16.mxu0 0
        %1926 = vmatpush1.bf16.msra.mxu0 0
        %1927 = vmatprep.subr.bf16.mxu0 0
        %1928 = vmatpush1.bf16.msra.mxu0 0
        %1929 = vmatprep.subr.bf16.mxu0 0
        %1930 = vmatpush1.bf16.msra.mxu0 0
        %1931 = vmatprep.subr.bf16.mxu0 0
        %1932 = vmatpush1.bf16.msra.mxu0 0
        %1933 = vmatprep.mubr.bf16.mxu0 0
        %1934 = vmatmul.mubr.bf16.gmra.mrb[0].mxu0 %v1890
        %v1935 = vpop.f32.mrb[0].mxu0
        %v1936 = vadd.f32 0.0, %v1935
        %v1937 = vpop.f32.mrb[0].mxu0
        %v1938 = vpop.f32.mrb[0].mxu0
        %v1939 = vadd.f32 0.0, %v1938
        %v1940 = vpop.f32.mrb[0].mxu0
        %1941 = vmatprep.mubr.bf16.mxu0 0
        %1942 = vmatmul.mubr.bf16.gmra.mrb[0].mxu0 %v1893
        %v1943 = vpop.f32.mrb[0].mxu0
        %v1944 = vadd.f32 0.0, %v1943
        %v1945 = vpop.f32.mrb[0].mxu0
        %v1946 = vpop.f32.mrb[0].mxu0
        %v1947 = vadd.f32 0.0, %v1946
        %v1948 = vpop.f32.mrb[0].mxu0
        %1949 = vmatprep.mubr.bf16.mxu0 0
        %1950 = vmatmul.mubr.bf16.gmra.mrb[0].mxu0 %v1896
        %v1951 = vpop.f32.mrb[0].mxu0
        %v1952 = vadd.f32 0.0, %v1951
        %v1953 = vpop.f32.mrb[0].mxu0
        %v1954 = vpop.f32.mrb[0].mxu0
        %v1955 = vadd.f32 0.0, %v1954
        %v1956 = vpop.f32.mrb[0].mxu0
        %1957 = vmatprep.mubr.bf16.mxu0 0
        %1958 = vmatmul.mubr.bf16.gmra.mrb[0].mxu0 %v1899
        %v1959 = vpop.f32.mrb[0].mxu0
        %v1960 = vadd.f32 0.0, %v1959
        %v1961 = vpop.f32.mrb[0].mxu0
        %v1962 = vpop.f32.mrb[0].mxu0
        %v1963 = vadd.f32 0.0, %v1962
        %v1964 = vpop.f32.mrb[0].mxu0
        %1965 = vdwg.mxu0
        %v1970 = vrot.slane %v1944, 7
        %v1971 = vsel %vm609, %v1970, %v1936
        %v1972 = vrot.slane %v1952, 6
        %v1973 = vsel %vm612, %v1972, %v1971
        %v1974 = vrot.slane %v1960, 5
        %v1975 = vsel %vm615, %v1974, %v1973
        %v1977 = vrot.slane %v1936, 1
        %v1978 = vsel %vm609, %v1944, %v1977
        %v1979 = vrot.slane %v1952, 7
        %v1980 = vsel %vm612, %v1979, %v1978
        %v1981 = vrot.slane %v1960, 6
        %v1982 = vsel %vm615, %v1981, %v1980
        %1983 = vrot.lane.b32.xlu0 %v1982, 16
        %v1984 = vpop.permute.xlu0 %1983
        %v1986 = vrot.slane %v1936, 2
        %v1987 = vrot.slane %v1944, 1
        %v1988 = vsel %vm609, %v1987, %v1986
        %v1989 = vsel %vm612, %v1952, %v1988
        %v1990 = vrot.slane %v1960, 7
        %v1991 = vsel %vm615, %v1990, %v1989
        %1992 = vrot.lane.b32.xlu0 %v1991, 32
        %v1993 = vpop.permute.xlu0 %1992
        %v1995 = vrot.slane %v1936, 3
        %v1996 = vrot.slane %v1944, 2
        %v1997 = vsel %vm609, %v1996, %v1995
        %v1998 = vrot.slane %v1952, 1
        %v1999 = vsel %vm612, %v1998, %v1997
        %v2000 = vsel %vm615, %v1960, %v1999
        %2001 = vrot.lane.b32.xlu0 %v2000, 48
        %v2002 = vpop.permute.xlu0 %2001
        %v2004 = vrot.slane %v1936, 4
        %v2005 = vrot.slane %v1944, 3
        %v2006 = vsel %vm609, %v2005, %v2004
        %v2007 = vrot.slane %v1952, 2
        %v2008 = vsel %vm612, %v2007, %v2006
        %v2009 = vrot.slane %v1960, 1
        %v2010 = vsel %vm615, %v2009, %v2008
        %2011 = vrot.lane.b32.xlu0 %v2010, 64
        %v2012 = vpop.permute.xlu0 %2011
        %v2014 = vrot.slane %v1936, 5
        %v2015 = vrot.slane %v1944, 4
        %v2016 = vsel %vm609, %v2015, %v2014
        %v2017 = vrot.slane %v1952, 3
        %v2018 = vsel %vm612, %v2017, %v2016
        %v2019 = vrot.slane %v1960, 2
        %v2020 = vsel %vm615, %v2019, %v2018
        %2021 = vrot.lane.b32.xlu0 %v2020, 80
        %v2022 = vpop.permute.xlu0 %2021
        %v2024 = vrot.slane %v1936, 6
        %v2025 = vrot.slane %v1944, 5
        %v2026 = vsel %vm609, %v2025, %v2024
        %v2027 = vrot.slane %v1952, 4
        %v2028 = vsel %vm612, %v2027, %v2026
        %v2029 = vrot.slane %v1960, 3
        %v2030 = vsel %vm615, %v2029, %v2028
        %2031 = vrot.lane.b32.xlu0 %v2030, 96
        %v2032 = vpop.permute.xlu0 %2031
        %v2034 = vrot.slane %v1936, 7
        %v2035 = vrot.slane %v1944, 6
        %v2036 = vsel %vm609, %v2035, %v2034
        %v2037 = vrot.slane %v1952, 5
        %v2038 = vsel %vm612, %v2037, %v2036
        %v2039 = vrot.slane %v1960, 4
        %v2040 = vsel %vm615, %v2039, %v2038
        %2041 = vrot.lane.b32.xlu0 %v2040, 112
        %v2042 = vpop.permute.xlu0 %2041
        %v2048 = vrot.slane %v1947, 7
        %v2049 = vsel %vm609, %v2048, %v1939
        %v2050 = vrot.slane %v1955, 6
        %v2051 = vsel %vm612, %v2050, %v2049
        %v2052 = vrot.slane %v1963, 5
        %v2053 = vsel %vm615, %v2052, %v2051
        %v2055 = vrot.slane %v1939, 1
        %v2056 = vsel %vm609, %v1947, %v2055
        %v2057 = vrot.slane %v1955, 7
        %v2058 = vsel %vm612, %v2057, %v2056
        %v2059 = vrot.slane %v1963, 6
        %v2060 = vsel %vm615, %v2059, %v2058
        %2061 = vrot.lane.b32.xlu0 %v2060, 16
        %v2062 = vpop.permute.xlu0 %2061
        %v2064 = vrot.slane %v1939, 2
        %v2065 = vrot.slane %v1947, 1
        %v2066 = vsel %vm609, %v2065, %v2064
        %v2067 = vsel %vm612, %v1955, %v2066
        %v2068 = vrot.slane %v1963, 7
        %v2069 = vsel %vm615, %v2068, %v2067
        %2070 = vrot.lane.b32.xlu0 %v2069, 32
        %v2071 = vpop.permute.xlu0 %2070
        %v2073 = vrot.slane %v1939, 3
        %v2074 = vrot.slane %v1947, 2
        %v2075 = vsel %vm609, %v2074, %v2073
        %v2076 = vrot.slane %v1955, 1
        %v2077 = vsel %vm612, %v2076, %v2075
        %v2078 = vsel %vm615, %v1963, %v2077
        %2079 = vrot.lane.b32.xlu0 %v2078, 48
        %v2080 = vpop.permute.xlu0 %2079
        %v2082 = vrot.slane %v1939, 4
        %v2083 = vrot.slane %v1947, 3
        %v2084 = vsel %vm609, %v2083, %v2082
        %v2085 = vrot.slane %v1955, 2
        %v2086 = vsel %vm612, %v2085, %v2084
        %v2087 = vrot.slane %v1963, 1
        %v2088 = vsel %vm615, %v2087, %v2086
        %2089 = vrot.lane.b32.xlu0 %v2088, 64
        %v2090 = vpop.permute.xlu0 %2089
        %v2092 = vrot.slane %v1939, 5
        %v2093 = vrot.slane %v1947, 4
        %v2094 = vsel %vm609, %v2093, %v2092
        %v2095 = vrot.slane %v1955, 3
        %v2096 = vsel %vm612, %v2095, %v2094
        %v2097 = vrot.slane %v1963, 2
        %v2098 = vsel %vm615, %v2097, %v2096
        %2099 = vrot.lane.b32.xlu0 %v2098, 80
        %v2100 = vpop.permute.xlu0 %2099
        %v2102 = vrot.slane %v1939, 6
        %v2103 = vrot.slane %v1947, 5
        %v2104 = vsel %vm609, %v2103, %v2102
        %v2105 = vrot.slane %v1955, 4
        %v2106 = vsel %vm612, %v2105, %v2104
        %v2107 = vrot.slane %v1963, 3
        %v2108 = vsel %vm615, %v2107, %v2106
        %2109 = vrot.lane.b32.xlu0 %v2108, 96
        %v2110 = vpop.permute.xlu0 %2109
        %v2112 = vrot.slane %v1939, 7
        %v2113 = vrot.slane %v1947, 6
        %v2114 = vsel %vm609, %v2113, %v2112
        %v2115 = vrot.slane %v1955, 5
        %v2116 = vsel %vm612, %v2115, %v2114
        %v2117 = vrot.slane %v1963, 4
        %v2118 = vsel %vm615, %v2117, %v2116
        %2119 = vrot.lane.b32.xlu0 %v2118, 112
        %v2120 = vpop.permute.xlu0 %2119
        %v2122 = vsel %vm373, %v1975, %v1984
        %v2123 = vsel %vm764, %v2122, %v1993
        %v2124 = vsel %vm766, %v2123, %v2002
        %v2125 = vsel %vm768, %v2124, %v2012
        %v2126 = vsel %vm770, %v2125, %v2022
        %v2127 = vsel %vm772, %v2126, %v2032
        %v2128 = vsel %vm774, %v2127, %v2042
        %v2129 = vsel %vm373, %v2053, %v2062
        %v2130 = vsel %vm764, %v2129, %v2071
        %v2131 = vsel %vm766, %v2130, %v2080
        %v2132 = vsel %vm768, %v2131, %v2090
        %v2133 = vsel %vm770, %v2132, %v2100
        %v2134 = vsel %vm772, %v2133, %v2110
        %v2135 = vsel %vm774, %v2134, %v2120
        %v2136 = vpack.c.bf16 %v2128, %v2128
        %v2137 = vpack.c.bf16 %v2135, %v2135
        %v2140 = vcombine.low %v2136, %v2137
        %v2142 = vunpack.c.l.s4 1983009808
        %v2143 = vunpack.c.0.s8 %v2142
        %v2144 = vlaneseq
        %v2145 = vshrl.u32 %v2144, 7
        %v2146 = vsub.s32 %v2143, %v2145
        %v2147 = vrot.slane %v2140, %v2146
        %2149 = vst [vmem:[#allocation2] sm:$0xf] %v2147
        %v2150 = vld [vmem:[#allocation3] sm:$0xff]
        %v2151 = vld [vmem:[#allocation3 + $0x8] sm:$0xff]
        %s2152 = scalar_lea.vmem %s328, 16
        %v2153 = vld [vmem:[%s2152] sm:$0xf]
        %v2154 = vld [vmem:[#allocation2] sm:$0xf]
        %v2157 = vunpack.c.l.s4 1983009808
        %v2158 = vunpack.c.0.s8 %v2157
        %v2159 = vlaneseq
        %v2160 = vshrl.u32 %v2159, 7
        %v2161 = vsub.s32 %v2158, %v2160
        %v2162 = vrot.slane %v2154, %v2161
        %v2163 = vcombine.high %v2162, %v2162
        %v2165 = vsel %vm810, %v2153, 0
        %v2168 = vsel %vm814, %v2162, 0
        %v2171 = vsel %vm814, %v2163, 0
        %2173 = vmatprep.subr.bf16.mxu0 %v2171
        %2174 = vmatpush1.bf16.msra.mxu0 %v2168
        %2175 = vmatprep.subr.bf16.mxu0 0
        %2176 = vmatpush1.bf16.msra.mxu0 0
        %2177 = vmatprep.subr.bf16.mxu0 0
        %2178 = vmatpush1.bf16.msra.mxu0 0
        %2179 = vmatprep.subr.bf16.mxu0 0
        %2180 = vmatpush1.bf16.msra.mxu0 0
        %2181 = vmatprep.subr.bf16.mxu0 0
        %2182 = vmatpush1.bf16.msra.mxu0 0
        %2183 = vmatprep.subr.bf16.mxu0 0
        %2184 = vmatpush1.bf16.msra.mxu0 0
        %2185 = vmatprep.subr.bf16.mxu0 0
        %2186 = vmatpush1.bf16.msra.mxu0 0
        %2187 = vmatprep.subr.bf16.mxu0 0
        %2188 = vmatpush1.bf16.msra.mxu0 0
        %2189 = vmatprep.subr.bf16.mxu0 0
        %2190 = vmatpush1.bf16.msra.mxu0 0
        %2191 = vmatprep.subr.bf16.mxu0 0
        %2192 = vmatpush1.bf16.msra.mxu0 0
        %2193 = vmatprep.subr.bf16.mxu0 0
        %2194 = vmatpush1.bf16.msra.mxu0 0
        %2195 = vmatprep.subr.bf16.mxu0 0
        %2196 = vmatpush1.bf16.msra.mxu0 0
        %2197 = vmatprep.subr.bf16.mxu0 0
        %2198 = vmatpush1.bf16.msra.mxu0 0
        %2199 = vmatprep.subr.bf16.mxu0 0
        %2200 = vmatpush1.bf16.msra.mxu0 0
        %2201 = vmatprep.subr.bf16.mxu0 0
        %2202 = vmatpush1.bf16.msra.mxu0 0
        %2203 = vmatprep.subr.bf16.mxu0 0
        %2204 = vmatpush1.bf16.msra.mxu0 0
        %2205 = vmatprep.mubr.bf16.mxu0 0
        %2206 = vmatmul.mubr.bf16.gmra.mrb[0].mxu0 %v2165
        %v2207 = vpop.f32.mrb[0].mxu0
        %v2208 = vadd.f32 0.0, %v2207
        %v2209 = vpop.f32.mrb[0].mxu0
        %v2210 = vadd.f32 0.0, %v2209
        %v2211 = vpop.f32.mrb[0].mxu0
        %v2212 = vpop.f32.mrb[0].mxu0
        %2213 = vdwg.mxu0
        %v2214 = vadd.f32 %v2150, %v2208
        %v2215 = vadd.f32 %v2151, %v2210
        %2216 = vst [vmem:[#allocation3] sm:$0xff] %v2214
        %2217 = vst [vmem:[#allocation3 + $0x8] sm:$0xff] %v2215
        // Predicated region
        $region86: #{tpu_custom_call.1} parent=76 // pred_check
          %p2218 = pneg %p331
        $region87: #{tpu_custom_call.1} parent=76 // pred_check_branch
          %2220 = sbr.rel (%p2218) target = $region89
        $region88: #{tpu_custom_call.1} parent=76 // pred_region
          %v2221 = vld [vmem:[#allocation3] sm:$0xff]
          %v2222 = vld [vmem:[#allocation3 + $0x8] sm:$0xff]
          %v2223 = vld [vmem:[%s4] sm:$0xff]
          %2225 = vset.pattern.permute.xlu0 0
          %2226 = vperm.xlu0 %2225, %v2223
          %v2227 = vpop.permute.xlu0 %2226
          %v2229 = vadd.f32 %v2221, %v2227
          %v2230 = vadd.f32 %v2222, %v2227
          %v2231 = vmax.f32 %v2229, 0.0
          %v2232 = vmax.f32 %v2230, 0.0
          %v2233 = vpack.c.bf16 %v2231, %v2231
          %v2234 = vpack.c.bf16 %v2232, %v2232
          %v2237 = vunpack.c.l.b16 %v2233
          %v2238 = vunpack.c.l.b16 %v2234
          %v2239 = vpack.c.b16 %v2238, %v2237
          %2241 = vst [vmem:[%s322] sm:$0xff] %v2239
        $region89: #{tpu_custom_call.1} parent=76 // pred_fallthru
          _
        %s2242 = sand.u32 %s156, 1
        %s2243 = scalar_lea.sflag [#allocation6], %s2242
        %s2244 = sand.u32 %s156, 1
        %s2245 = smul.addr %s2244, 8
        %s2246 = scalar_lea.vmem [#allocation5], %s2245
        // Predicated region
        $region90: #{tpu_custom_call.1} parent=76 // pred_check
          %p2247 = pneg %p166
        $region91: #{tpu_custom_call.1} parent=76 // pred_check_branch
          %2249 = sbr.rel (%p2247) target = $region93
        $region92: #{tpu_custom_call.1} parent=76 // pred_region
          %s2250 = smul.u32 2, %s23
          %s2252 = ssub.s32 128, 128
          %2253 = vsyncadd %s2243, %s2252
          %s2254 = smul.addr %s2250, 64
          %s2255 = scalar_lea.hbm %s5, %s2254
          %s2257 = sshll.u32 %s2246, 4
          %s2258 = int_to_ptr.vmem [resolvable:$true] %s2257
          %2260 = dma.vmem_to_hbm [thread:$0]  %s2258, 128, %s2255, %s2243
        $region93: #{tpu_custom_call.1} parent=76 // pred_fallthru
          _
      $region77: #{tpu_custom_call.1} parent=5 // pred_fallthru
        _
      %p2261 = scmp.le.s32.totalorder 2, %s14
      // Predicated region
      $region94: #{tpu_custom_call.1} parent=5 // pred_check
        %p2262 = pneg %p2261
      $region95: #{tpu_custom_call.1} parent=5 // pred_check_branch
        %2264 = sbr.rel (%p2262) target = $region97
      $region96: #{tpu_custom_call.1} parent=5 // pred_region
        %s2265 = ssub.s32 %s14, 2
        // Predicated region
        $region98: #{tpu_custom_call.1} parent=96 // pred_check
          %p2266 = pneg %p172
        $region99: #{tpu_custom_call.1} parent=96 // pred_check_branch
          %2268 = sbr.rel (%p2266) target = $region101
        $region100: #{tpu_custom_call.1} parent=96 // pred_region
          %s2269 = sand.u32 %s157, 1
          %s2270 = scalar_lea.sflag [#allocation6], %s2269
          %s2271 = sand.u32 %s157, 1
          %s2272 = smul.addr %s2271, 8
          %s2273 = scalar_lea.vmem [#allocation5], %s2272
          %2274 = dma.done %s2270, 128
        $region101: #{tpu_custom_call.1} parent=96 // pred_fallthru
          _
      $region97: #{tpu_custom_call.1} parent=5 // pred_fallthru
        _
    $region6: #{tpu_custom_call.1} parent=1 // loop_footer
      %s18 = sadd.s32 1, %s14
    $region7: #{tpu_custom_call.1} parent=1 // loop_footer_branch
      %13 = sbr.rel target = $region3
    $region8: #{tpu_custom_call.1} parent=1 // loop_exit
      _
    %2275 = vsyncpa [#allocation6], 1
    %s2276 = scalar_lea.sflag [#allocation6], 1
    %2277 = vsyncpa %s2276, 1

</llo_original>
